<compile_context>
chip_gen: v7x
topology: tpu7x:2x2x1
jax: 0.10.0
libtpu: 0.0.40
codegen_flags: <defaults>
</compile_context>

<pallas_src>
import functools

import jax
import jax.numpy as jnp
from jax.experimental import pallas as pl
from jax.experimental.pallas import tpu as pltpu


def _round_up(v, m):
    return ((v + m - 1) // m) * m


def _pick_tile(n_pad):
    for cand in (512, 256, 128):
        if n_pad % cand == 0:
            return cand
    return n_pad


def _pad2(a, rows, cols):
    return jnp.pad(a, ((0, rows - a.shape[0]), (0, cols - a.shape[1])))


# ---------------------------------------------------------------------------
# Pass 1:  acc = A @ x  (k-reduction over adjacency columns, width F_in)
#          on last k-step:
#            h        = dropout(leaky_relu(acc @ W1 + b1))
#            g        = h @ W2            (bf16, consumed by pass-2 aggregation)
#            identity = x_rows @ Wd + bd  (f32 residual path)
# ---------------------------------------------------------------------------
def _pass1_kernel(a_ref, xk_ref, xrow_ref, mask_ref,
                  w1_ref, b1_ref, wd_ref, bd_ref, w2_ref,
                  g_ref, id_ref, acc_ref):
    k = pl.program_id(1)

    @pl.when(k == 0)
    def _():
        acc_ref[...] = jnp.zeros_like(acc_ref)

    acc_ref[...] += jnp.dot(a_ref[...], xk_ref[...],
                            preferred_element_type=jnp.float32)

    @pl.when(k == pl.num_programs(1) - 1)
    def _():
        ax = acc_ref[...]
        h = jnp.dot(ax, w1_ref[...], preferred_element_type=jnp.float32) + b1_ref[...]
        h = jnp.maximum(h, 0.01 * h)              # leaky_relu, slope 0.01
        h = h * mask_ref[...]                     # dropout mask in {0, 1/(1-p)}
        g_ref[...] = jnp.dot(h, w2_ref[...],
                             preferred_element_type=jnp.float32).astype(g_ref.dtype)
        id_ref[...] = (jnp.dot(xrow_ref[...], wd_ref[...],
                               preferred_element_type=jnp.float32) + bd_ref[...])


# ---------------------------------------------------------------------------
# Pass 2:  acc = A @ g  (k-reduction, width nfeat)
#          on last k-step:  out = leaky_relu(acc + b2) + identity
# ---------------------------------------------------------------------------
def _pass2_kernel(a_ref, gk_ref, b2_ref, id_ref, out_ref, acc_ref):
    k = pl.program_id(1)

    @pl.when(k == 0)
    def _():
        acc_ref[...] = jnp.zeros_like(acc_ref)

    acc_ref[...] += jnp.dot(a_ref[...], gk_ref[...],
                            preferred_element_type=jnp.float32)

    @pl.when(k == pl.num_programs(1) - 1)
    def _():
        o = acc_ref[...] + b2_ref[...]
        o = jnp.maximum(o, 0.01 * o)
        out_ref[...] = o + id_ref[...]


def _gcn_norm_adj(edge_idx, num_nodes):
    """Dense D^-1/2 (A + I) D^-1/2 from a (2, E) edge index (JAX glue)."""
    src, dst = edge_idx[0], edge_idx[1]
    loop = jnp.arange(num_nodes, dtype=edge_idx.dtype)
    src = jnp.concatenate([src, loop])
    dst = jnp.concatenate([dst, loop])
    adj = jnp.zeros((num_nodes, num_nodes), jnp.float32).at[dst, src].add(1.0)
    deg = adj.sum(axis=1)                                   # in-degree incl. self loop
    dinv = jnp.where(deg > 0, 1.0 / jnp.sqrt(deg), 0.0)
    return dinv[:, None] * adj * dinv[None, :]


@functools.partial(jax.jit, static_argnames=("num_nodes",))
def res_gcn_decoder(x, edge_idx, params, dropout_key, *, num_nodes):
    n, f_in = x.shape
    f_hid = params["w1"].shape[1]
    f_out = params["wd"].shape[1]

    # Lane-dense padded sizes.
    FI = _round_up(f_in, 128)
    FH = _round_up(f_hid, 128)
    FO = _round_up(f_out, 128)
    n_pad = _round_up(num_nodes, 128)
    TM = TK = _pick_tile(n_pad)
    grid = (n_pad // TM, n_pad // TK)

    # Dense normalized adjacency; bf16 for the memory-bound aggregation.
    a = _gcn_norm_adj(edge_idx, num_nodes)
    a = _pad2(a, n_pad, n_pad).astype(jnp.bfloat16)

    x_f32 = _pad2(x.astype(jnp.float32), n_pad, FI)
    x_bf16 = x_f32.astype(jnp.bfloat16)

    # Dropout p=0.5, training mode: keep -> 1/(1-p)=2, drop -> 0.
    mask = jax.random.bernoulli(dropout_key, 0.5, (n_pad, FH)).astype(jnp.float32) * 2.0

    w1 = _pad2(params["w1"], FI, FH)
    b1 = _pad2(params["b1"], 1, FH)
    w2 = _pad2(params["w2"], FH, FO)
    b2 = _pad2(params["b2"], 1, FO)
    wd = _pad2(params["wd"], FI, FO)
    bd = _pad2(params["bd"], 1, FO)

    cparams = pltpu.CompilerParams(dimension_semantics=("parallel", "arbitrary"))

    g, ident = pl.pallas_call(
        _pass1_kernel,
        out_shape=(jax.ShapeDtypeStruct((n_pad, FO), jnp.bfloat16),
                   jax.ShapeDtypeStruct((n_pad, FO), jnp.float32)),
        grid_spec=pltpu.PrefetchScalarGridSpec(
            num_scalar_prefetch=0,
            grid=grid,
            in_specs=[
                pl.BlockSpec((TM, TK), lambda i, k: (i, k)),   # A tile (bf16)
                pl.BlockSpec((TK, FI), lambda i, k: (k, 0)),   # x k-rows (bf16)
                pl.BlockSpec((TM, FI), lambda i, k: (i, 0)),   # x row tile (f32)
                pl.BlockSpec((TM, FH), lambda i, k: (i, 0)),   # dropout mask
                pl.BlockSpec((FI, FH), lambda i, k: (0, 0)),   # w1
                pl.BlockSpec((1, FH), lambda i, k: (0, 0)),    # b1
                pl.BlockSpec((FI, FO), lambda i, k: (0, 0)),   # wd
                pl.BlockSpec((1, FO), lambda i, k: (0, 0)),    # bd
                pl.BlockSpec((FH, FO), lambda i, k: (0, 0)),   # w2
            ],
            out_specs=[
                pl.BlockSpec((TM, FO), lambda i, k: (i, 0)),   # g = dropout(h) @ W2
                pl.BlockSpec((TM, FO), lambda i, k: (i, 0)),   # identity
            ],
            scratch_shapes=[pltpu.VMEM((TM, FI), jnp.float32)],
        ),
        compiler_params=cparams,
    )(a, x_bf16, x_f32, mask, w1, b1, wd, bd, w2)

    out_pad = pl.pallas_call(
        _pass2_kernel,
        out_shape=jax.ShapeDtypeStruct((n_pad, FO), jnp.float32),
        grid_spec=pltpu.PrefetchScalarGridSpec(
            num_scalar_prefetch=0,
            grid=grid,
            in_specs=[
                pl.BlockSpec((TM, TK), lambda i, k: (i, k)),   # A tile (bf16)
                pl.BlockSpec((TK, FO), lambda i, k: (k, 0)),   # g k-rows (bf16)
                pl.BlockSpec((1, FO), lambda i, k: (0, 0)),    # b2
                pl.BlockSpec((TM, FO), lambda i, k: (i, 0)),   # identity row tile
            ],
            out_specs=pl.BlockSpec((TM, FO), lambda i, k: (i, 0)),
            scratch_shapes=[pltpu.VMEM((TM, FO), jnp.float32)],
        ),
        compiler_params=cparams,
    )(a, g, b2, ident)

    return out_pad[:num_nodes, :f_out]


def init_params(key, nfeat, nhid):
    """Deterministic parameter init matching the module's shapes."""
    k1, k2, k3, k4, k5, k6 = jax.random.split(key, 6)
    fin = nhid // 2
    s1 = 1.0 / jnp.sqrt(fin)
    s2 = 1.0 / jnp.sqrt(nhid)
    return {
        # gc1: GCNConv(nhid//2, nhid)
        "w1": jax.random.uniform(k1, (fin, nhid), jnp.float32, -s1, s1),
        "b1": jax.random.uniform(k2, (1, nhid), jnp.float32, -s1, s1),
        # gc2: GCNConv(nhid, nfeat)
        "w2": jax.random.uniform(k3, (nhid, nfeat), jnp.float32, -s2, s2),
        "b2": jax.random.uniform(k4, (1, nfeat), jnp.float32, -s2, s2),
        # downsample: nn.Linear(nhid//2, nfeat)
        "wd": jax.random.uniform(k5, (fin, nfeat), jnp.float32, -s1, s1),
        "bd": jax.random.uniform(k6, (1, nfeat), jnp.float32, -s1, s1),
    }


if __name__ == "__main__":
    N = 16        # number of graph nodes
    NFEAT = 8     # decoder output feature dim
    NHID = 32     # hidden dim (gc1 input is NHID // 2 = 16)
    E = 32        # number of edges

    key = jax.random.PRNGKey(0)
    kx, ke, kp, kd = jax.random.split(key, 4)

    x = jax.random.normal(kx, (N, NHID // 2), jnp.float32)
    edge_idx = jax.random.randint(ke, (2, E), 0, N, dtype=jnp.int32)
    params = init_params(kp, NFEAT, NHID)

    out = res_gcn_decoder(x, edge_idx, params, kd, num_nodes=N)
    jax.block_until_ready(out)
    assert out.shape == (N, NFEAT) and out.dtype == jnp.float32
    print("KERNEL_OK")
</pallas_src>

<mosaic_0001>
module attributes {stable_mosaic.version = 11 : i64} {
  func.func private @main(%arg0: i32) attributes {dimension_semantics = [#tpu.dimension_semantics<core_parallel>], iteration_bounds = array<i64: 2>, tpu.core_type = #tpu.core_type<sc_scalar_subcore>, window_params = []} {
    return
  }
}

module attributes {stable_mosaic.version = 11 : i64} {
  func.func private @main(%arg0: i32) attributes {dimension_semantics = [#tpu.dimension_semantics<core_parallel>], iteration_bounds = array<i64: 2>, tpu.core_type = #tpu.core_type<sc_scalar_subcore>, window_params = []} {
    return
  }
}

module attributes {stable_mosaic.version = 11 : i64} {
  func.func @_pass2_kernel(%arg0: i32, %arg1: i32, %arg2: memref<128x128xbf16, #tpu.memory_space<vmem>>, %arg3: memref<128x128xbf16, #tpu.memory_space<vmem>>, %arg4: memref<1x128xf32, #tpu.memory_space<vmem>>, %arg5: memref<128x128xf32, #tpu.memory_space<vmem>>, %arg6: memref<128x128xf32, #tpu.memory_space<vmem>>, %arg7: memref<128x128xf32, #tpu.memory_space<vmem>>) attributes {dimension_semantics = [#tpu.dimension_semantics<parallel>, #tpu.dimension_semantics<arbitrary>], iteration_bounds = array<i64: 1, 1>, scalar_prefetch = 0 : i64, scratch_operands = 1 : i64, tpu.core_type = #tpu.core_type<tc>, window_params = [{transform_indices = @transform_0, window_bounds = array<i64: 128, 128>}, {transform_indices = @transform_1, window_bounds = array<i64: 128, 128>}, {pipeline_mode = #tpu.pipeline_mode<synchronous>, transform_indices = @transform_2, window_bounds = array<i64: 1, 128>}, {transform_indices = @transform_3, window_bounds = array<i64: 128, 128>}, {transform_indices = @transform_4, window_bounds = array<i64: 128, 128>}]} {
    %c0_i32 = arith.constant 0 : i32
    %0 = arith.cmpi eq, %arg1, %c0_i32 : i32
    %1 = arith.extui %0 : i1 to i32
    %c0_i32_0 = arith.constant 0 : i32
    %2 = arith.cmpi ne, %1, %c0_i32_0 : i32
    scf.if %2 {
      %cst_10 = arith.constant 0.000000e+00 : f32
      %12 = vector.broadcast %cst_10 : f32 to vector<128x128xf32>
      %c0_11 = arith.constant 0 : index
      %c0_12 = arith.constant 0 : index
      %13 = vector.load %arg7[%c0_11, %c0_12] : memref<128x128xf32, #tpu.memory_space<vmem>>, vector<128x128xf32>
      tpu.vector_store %arg7[%c0_11, %c0_12], %12 {strides = array<i32>} : memref<128x128xf32, #tpu.memory_space<vmem>>, vector<128x128xf32>,
    } else {
    }
    %c0 = arith.constant 0 : index
    %c0_1 = arith.constant 0 : index
    %3 = vector.load %arg7[%c0, %c0_1] : memref<128x128xf32, #tpu.memory_space<vmem>>, vector<128x128xf32>
    %c0_2 = arith.constant 0 : index
    %c0_3 = arith.constant 0 : index
    %4 = vector.load %arg2[%c0_2, %c0_3] : memref<128x128xbf16, #tpu.memory_space<vmem>>, vector<128x128xbf16>
    %c0_4 = arith.constant 0 : index
    %c0_5 = arith.constant 0 : index
    %5 = vector.load %arg3[%c0_4, %c0_5] : memref<128x128xbf16, #tpu.memory_space<vmem>>, vector<128x128xbf16>
    %cst = arith.constant dense<0.000000e+00> : vector<128x128xf32>
    %6 = tpu.matmul %4, %5, %cst {dimension_numbers = #tpu.dot_dimension_numbers<[1], [0], [0], [1], [0, 0, 1, 1], [], []>} : vector<128x128xbf16>, vector<128x128xbf16>, vector<128x128xf32> -> vector<128x128xf32>
    %7 = arith.addf %3, %6 : vector<128x128xf32>
    %c0_6 = arith.constant 0 : index
    %c0_7 = arith.constant 0 : index
    %8 = vector.load %arg7[%c0_6, %c0_7] : memref<128x128xf32, #tpu.memory_space<vmem>>, vector<128x128xf32>
    tpu.vector_store %arg7[%c0_6, %c0_7], %7 {strides = array<i32>} : memref<128x128xf32, #tpu.memory_space<vmem>>, vector<128x128xf32>,
    %c0_i32_8 = arith.constant 0 : i32
    %9 = arith.cmpi eq, %arg1, %c0_i32_8 : i32
    %10 = arith.extui %9 : i1 to i32
    %c0_i32_9 = arith.constant 0 : i32
    %11 = arith.cmpi ne, %10, %c0_i32_9 : i32
    scf.if %11 {
      %c0_10 = arith.constant 0 : index
      %c0_11 = arith.constant 0 : index
      %12 = vector.load %arg7[%c0_10, %c0_11] : memref<128x128xf32, #tpu.memory_space<vmem>>, vector<128x128xf32>
      %c0_12 = arith.constant 0 : index
      %c0_13 = arith.constant 0 : index
      %13 = vector.load %arg4[%c0_12, %c0_13] : memref<1x128xf32, #tpu.memory_space<vmem>>, vector<1x128xf32>
      %14 = vector.broadcast %13 : vector<1x128xf32> to vector<128x128xf32>
      %15 = arith.addf %12, %14 : vector<128x128xf32>
      %cst_14 = arith.constant 0.00999999977 : f32
      %16 = vector.broadcast %cst_14 : f32 to vector<128x128xf32>
      %17 = arith.mulf %16, %15 : vector<128x128xf32>
      %18 = arith.maximumf %15, %17 : vector<128x128xf32>
      %c0_15 = arith.constant 0 : index
      %c0_16 = arith.constant 0 : index
      %19 = vector.load %arg5[%c0_15, %c0_16] : memref<128x128xf32, #tpu.memory_space<vmem>>, vector<128x128xf32>
      %20 = arith.addf %18, %19 : vector<128x128xf32>
      %c0_17 = arith.constant 0 : index
      %c0_18 = arith.constant 0 : index
      %21 = vector.load %arg6[%c0_17, %c0_18] : memref<128x128xf32, #tpu.memory_space<vmem>>, vector<128x128xf32>
      tpu.vector_store %arg6[%c0_17, %c0_18], %20 {strides = array<i32>} : memref<128x128xf32, #tpu.memory_space<vmem>>, vector<128x128xf32>,
    } else {
    }
    return
  }
  func.func @transform_0(%arg0: i32, %arg1: i32) -> (i32, i32) {
    %c0_i32 = arith.constant 0 : i32
    return %arg0, %arg1 : i32, i32
  }
  func.func @transform_1(%arg0: i32, %arg1: i32) -> (i32, i32) {
    %c0_i32 = arith.constant 0 : i32
    %c0_i32_0 = arith.constant 0 : i32
    return %arg1, %c0_i32 : i32, i32
  }
  func.func @transform_2(%arg0: i32, %arg1: i32) -> (i32, i32) {
    %c0_i32 = arith.constant 0 : i32
    %c0_i32_0 = arith.constant 0 : i32
    %c0_i32_1 = arith.constant 0 : i32
    return %c0_i32, %c0_i32_0 : i32, i32
  }
  func.func @transform_3(%arg0: i32, %arg1: i32) -> (i32, i32) {
    %c0_i32 = arith.constant 0 : i32
    %c0_i32_0 = arith.constant 0 : i32
    return %arg0, %c0_i32 : i32, i32
  }
  func.func @transform_4(%arg0: i32, %arg1: i32) -> (i32, i32) {
    %c0_i32 = arith.constant 0 : i32
    %c0_i32_0 = arith.constant 0 : i32
    return %arg0, %c0_i32 : i32, i32
  }
}

module attributes {stable_mosaic.version = 11 : i64} {
  func.func @_pass1_kernel(%arg0: i32, %arg1: i32, %arg2: memref<128x128xbf16, #tpu.memory_space<vmem>>, %arg3: memref<128x128xbf16, #tpu.memory_space<vmem>>, %arg4: memref<128x128xf32, #tpu.memory_space<vmem>>, %arg5: memref<128x128xf32, #tpu.memory_space<vmem>>, %arg6: memref<128x128xf32, #tpu.memory_space<vmem>>, %arg7: memref<1x128xf32, #tpu.memory_space<vmem>>, %arg8: memref<128x128xf32, #tpu.memory_space<vmem>>, %arg9: memref<1x128xf32, #tpu.memory_space<vmem>>, %arg10: memref<128x128xf32, #tpu.memory_space<vmem>>, %arg11: memref<128x128xbf16, #tpu.memory_space<vmem>>, %arg12: memref<128x128xf32, #tpu.memory_space<vmem>>, %arg13: memref<128x128xf32, #tpu.memory_space<vmem>>) attributes {dimension_semantics = [#tpu.dimension_semantics<parallel>, #tpu.dimension_semantics<arbitrary>], iteration_bounds = array<i64: 1, 1>, scalar_prefetch = 0 : i64, scratch_operands = 1 : i64, tpu.core_type = #tpu.core_type<tc>, window_params = [{transform_indices = @transform_0, window_bounds = array<i64: 128, 128>}, {transform_indices = @transform_1, window_bounds = array<i64: 128, 128>}, {transform_indices = @transform_2, window_bounds = array<i64: 128, 128>}, {transform_indices = @transform_3, window_bounds = array<i64: 128, 128>}, {pipeline_mode = #tpu.pipeline_mode<synchronous>, transform_indices = @transform_4, window_bounds = array<i64: 128, 128>}, {pipeline_mode = #tpu.pipeline_mode<synchronous>, transform_indices = @transform_5, window_bounds = array<i64: 1, 128>}, {pipeline_mode = #tpu.pipeline_mode<synchronous>, transform_indices = @transform_6, window_bounds = array<i64: 128, 128>}, {pipeline_mode = #tpu.pipeline_mode<synchronous>, transform_indices = @transform_7, window_bounds = array<i64: 1, 128>}, {pipeline_mode = #tpu.pipeline_mode<synchronous>, transform_indices = @transform_8, window_bounds = array<i64: 128, 128>}, {transform_indices = @transform_9, window_bounds = array<i64: 128, 128>}, {transform_indices = @transform_10, window_bounds = array<i64: 128, 128>}]} {
    %c0_i32 = arith.constant 0 : i32
    %0 = arith.cmpi eq, %arg1, %c0_i32 : i32
    %1 = arith.extui %0 : i1 to i32
    %c0_i32_0 = arith.constant 0 : i32
    %2 = arith.cmpi ne, %1, %c0_i32_0 : i32
    scf.if %2 {
      %cst_10 = arith.constant 0.000000e+00 : f32
      %12 = vector.broadcast %cst_10 : f32 to vector<128x128xf32>
      %c0_11 = arith.constant 0 : index
      %c0_12 = arith.constant 0 : index
      %13 = vector.load %arg13[%c0_11, %c0_12] : memref<128x128xf32, #tpu.memory_space<vmem>>, vector<128x128xf32>
      tpu.vector_store %arg13[%c0_11, %c0_12], %12 {strides = array<i32>} : memref<128x128xf32, #tpu.memory_space<vmem>>, vector<128x128xf32>,
    } else {
    }
    %c0 = arith.constant 0 : index
    %c0_1 = arith.constant 0 : index
    %3 = vector.load %arg13[%c0, %c0_1] : memref<128x128xf32, #tpu.memory_space<vmem>>, vector<128x128xf32>
    %c0_2 = arith.constant 0 : index
    %c0_3 = arith.constant 0 : index
    %4 = vector.load %arg2[%c0_2, %c0_3] : memref<128x128xbf16, #tpu.memory_space<vmem>>, vector<128x128xbf16>
    %c0_4 = arith.constant 0 : index
    %c0_5 = arith.constant 0 : index
    %5 = vector.load %arg3[%c0_4, %c0_5] : memref<128x128xbf16, #tpu.memory_space<vmem>>, vector<128x128xbf16>
    %cst = arith.constant dense<0.000000e+00> : vector<128x128xf32>
    %6 = tpu.matmul %4, %5, %cst {dimension_numbers = #tpu.dot_dimension_numbers<[1], [0], [0], [1], [0, 0, 1, 1], [], []>} : vector<128x128xbf16>, vector<128x128xbf16>, vector<128x128xf32> -> vector<128x128xf32>
    %7 = arith.addf %3, %6 : vector<128x128xf32>
    %c0_6 = arith.constant 0 : index
    %c0_7 = arith.constant 0 : index
    %8 = vector.load %arg13[%c0_6, %c0_7] : memref<128x128xf32, #tpu.memory_space<vmem>>, vector<128x128xf32>
    tpu.vector_store %arg13[%c0_6, %c0_7], %7 {strides = array<i32>} : memref<128x128xf32, #tpu.memory_space<vmem>>, vector<128x128xf32>,
    %c0_i32_8 = arith.constant 0 : i32
    %9 = arith.cmpi eq, %arg1, %c0_i32_8 : i32
    %10 = arith.extui %9 : i1 to i32
    %c0_i32_9 = arith.constant 0 : i32
    %11 = arith.cmpi ne, %10, %c0_i32_9 : i32
    scf.if %11 {
      %c0_10 = arith.constant 0 : index
      %c0_11 = arith.constant 0 : index
      %12 = vector.load %arg13[%c0_10, %c0_11] : memref<128x128xf32, #tpu.memory_space<vmem>>, vector<128x128xf32>
      %c0_12 = arith.constant 0 : index
      %c0_13 = arith.constant 0 : index
      %13 = vector.load %arg6[%c0_12, %c0_13] : memref<128x128xf32, #tpu.memory_space<vmem>>, vector<128x128xf32>
      %cst_14 = arith.constant dense<0.000000e+00> : vector<128x128xf32>
      %14 = tpu.matmul %12, %13, %cst_14 {dimension_numbers = #tpu.dot_dimension_numbers<[1], [0], [0], [1], [0, 0, 1, 1], [], []>} : vector<128x128xf32>, vector<128x128xf32>, vector<128x128xf32> -> vector<128x128xf32>
      %c0_15 = arith.constant 0 : index
      %c0_16 = arith.constant 0 : index
      %15 = vector.load %arg7[%c0_15, %c0_16] : memref<1x128xf32, #tpu.memory_space<vmem>>, vector<1x128xf32>
      %16 = vector.broadcast %15 : vector<1x128xf32> to vector<128x128xf32>
      %17 = arith.addf %14, %16 : vector<128x128xf32>
      %cst_17 = arith.constant 0.00999999977 : f32
      %18 = vector.broadcast %cst_17 : f32 to vector<128x128xf32>
      %19 = arith.mulf %18, %17 : vector<128x128xf32>
      %20 = arith.maximumf %17, %19 : vector<128x128xf32>
      %c0_18 = arith.constant 0 : index
      %c0_19 = arith.constant 0 : index
      %21 = vector.load %arg5[%c0_18, %c0_19] : memref<128x128xf32, #tpu.memory_space<vmem>>, vector<128x128xf32>
      %22 = arith.mulf %20, %21 : vector<128x128xf32>
      %c0_20 = arith.constant 0 : index
      %c0_21 = arith.constant 0 : index
      %23 = vector.load %arg10[%c0_20, %c0_21] : memref<128x128xf32, #tpu.memory_space<vmem>>, vector<128x128xf32>
      %cst_22 = arith.constant dense<0.000000e+00> : vector<128x128xf32>
      %24 = tpu.matmul %22, %23, %cst_22 {dimension_numbers = #tpu.dot_dimension_numbers<[1], [0], [0], [1], [0, 0, 1, 1], [], []>} : vector<128x128xf32>, vector<128x128xf32>, vector<128x128xf32> -> vector<128x128xf32>
      %25 = arith.truncf %24 : vector<128x128xf32> to vector<128x128xbf16>
      %c0_23 = arith.constant 0 : index
      %c0_24 = arith.constant 0 : index
      %26 = vector.load %arg11[%c0_23, %c0_24] : memref<128x128xbf16, #tpu.memory_space<vmem>>, vector<128x128xbf16>
      tpu.vector_store %arg11[%c0_23, %c0_24], %25 {strides = array<i32>} : memref<128x128xbf16, #tpu.memory_space<vmem>>, vector<128x128xbf16>,
      %c0_25 = arith.constant 0 : index
      %c0_26 = arith.constant 0 : index
      %27 = vector.load %arg4[%c0_25, %c0_26] : memref<128x128xf32, #tpu.memory_space<vmem>>, vector<128x128xf32>
      %c0_27 = arith.constant 0 : index
      %c0_28 = arith.constant 0 : index
      %28 = vector.load %arg8[%c0_27, %c0_28] : memref<128x128xf32, #tpu.memory_space<vmem>>, vector<128x128xf32>
      %cst_29 = arith.constant dense<0.000000e+00> : vector<128x128xf32>
      %29 = tpu.matmul %27, %28, %cst_29 {dimension_numbers = #tpu.dot_dimension_numbers<[1], [0], [0], [1], [0, 0, 1, 1], [], []>} : vector<128x128xf32>, vector<128x128xf32>, vector<128x128xf32> -> vector<128x128xf32>
      %c0_30 = arith.constant 0 : index
      %c0_31 = arith.constant 0 : index
      %30 = vector.load %arg9[%c0_30, %c0_31] : memref<1x128xf32, #tpu.memory_space<vmem>>, vector<1x128xf32>
      %31 = vector.broadcast %30 : vector<1x128xf32> to vector<128x128xf32>
      %32 = arith.addf %29, %31 : vector<128x128xf32>
      %c0_32 = arith.constant 0 : index
      %c0_33 = arith.constant 0 : index
      %33 = vector.load %arg12[%c0_32, %c0_33] : memref<128x128xf32, #tpu.memory_space<vmem>>, vector<128x128xf32>
      tpu.vector_store %arg12[%c0_32, %c0_33], %32 {strides = array<i32>} : memref<128x128xf32, #tpu.memory_space<vmem>>, vector<128x128xf32>,
    } else {
    }
    return
  }
  func.func @transform_0(%arg0: i32, %arg1: i32) -> (i32, i32) {
    %c0_i32 = arith.constant 0 : i32
    return %arg0, %arg1 : i32, i32
  }
  func.func @transform_1(%arg0: i32, %arg1: i32) -> (i32, i32) {
    %c0_i32 = arith.constant 0 : i32
    %c0_i32_0 = arith.constant 0 : i32
    return %arg1, %c0_i32 : i32, i32
  }
  func.func @transform_2(%arg0: i32, %arg1: i32) -> (i32, i32) {
    %c0_i32 = arith.constant 0 : i32
    %c0_i32_0 = arith.constant 0 : i32
    return %arg0, %c0_i32 : i32, i32
  }
  func.func @transform_3(%arg0: i32, %arg1: i32) -> (i32, i32) {
    %c0_i32 = arith.constant 0 : i32
    %c0_i32_0 = arith.constant 0 : i32
    return %arg0, %c0_i32 : i32, i32
  }
  func.func @transform_4(%arg0: i32, %arg1: i32) -> (i32, i32) {
    %c0_i32 = arith.constant 0 : i32
    %c0_i32_0 = arith.constant 0 : i32
    %c0_i32_1 = arith.constant 0 : i32
    return %c0_i32, %c0_i32_0 : i32, i32
  }
  func.func @transform_5(%arg0: i32, %arg1: i32) -> (i32, i32) {
    %c0_i32 = arith.constant 0 : i32
    %c0_i32_0 = arith.constant 0 : i32
    %c0_i32_1 = arith.constant 0 : i32
    return %c0_i32, %c0_i32_0 : i32, i32
  }
  func.func @transform_6(%arg0: i32, %arg1: i32) -> (i32, i32) {
    %c0_i32 = arith.constant 0 : i32
    %c0_i32_0 = arith.constant 0 : i32
    %c0_i32_1 = arith.constant 0 : i32
    return %c0_i32, %c0_i32_0 : i32, i32
  }
  func.func @transform_7(%arg0: i32, %arg1: i32) -> (i32, i32) {
    %c0_i32 = arith.constant 0 : i32
    %c0_i32_0 = arith.constant 0 : i32
    %c0_i32_1 = arith.constant 0 : i32
    return %c0_i32, %c0_i32_0 : i32, i32
  }
  func.func @transform_8(%arg0: i32, %arg1: i32) -> (i32, i32) {
    %c0_i32 = arith.constant 0 : i32
    %c0_i32_0 = arith.constant 0 : i32
    %c0_i32_1 = arith.constant 0 : i32
    return %c0_i32, %c0_i32_0 : i32, i32
  }
  func.func @transform_9(%arg0: i32, %arg1: i32) -> (i32, i32) {
    %c0_i32 = arith.constant 0 : i32
    %c0_i32_0 = arith.constant 0 : i32
    return %arg0, %c0_i32 : i32, i32
  }
  func.func @transform_10(%arg0: i32, %arg1: i32) -> (i32, i32) {
    %c0_i32 = arith.constant 0 : i32
    %c0_i32_0 = arith.constant 0 : i32
    return %arg0, %c0_i32 : i32, i32
  }
}

</mosaic_0001>

<llo_original>
// kernel: res_gcn_decoder.3
$region0: #{res_gcn_decoder.3}
  #allocation0 [shape = 'u32[]', space=smem, size = 0x4, offset = 0x4, fixed_abs, tag = 'smem constant byte address 0x4 - core index']
  #allocation1 [shape = 'u32[144,128]{1,0:T(1,128)}', space=vmem, size = 0x12000, scoped, tag = 'internal scratch']
  #allocation2 [shape = 'f32[128,128]{1,0:T(8,128)}', space=vmem, size = 0x10000, scoped, tag = 'scratch operand']
  %s0 = inlined_call_operand.vmem [shape: bf16[128,128], index: 0, kind: input, shape index: {}]
  %s1 = inlined_call_operand.vmem [shape: bf16[128,128], index: 1, kind: input, shape index: {}]
  %s2 = inlined_call_operand.vmem [shape: f32[1,128], index: 2, kind: input, shape index: {}]
  %s3 = inlined_call_operand.vmem [shape: f32[128,128], index: 3, kind: input, shape index: {}]
  %s4 = inlined_call_operand.vmem [shape: f32[128,128], index: 4, kind: output, shape index: {}]
  %s5 = sld [smem:[#allocation0]]
  $region34: #{res_gcn_decoder.3} parent=0
    _
  %s7 = ssub.s32 1, %s5
  %s8 = scalar_select 0, %s7, %s5
  // Predicated region
  $region2: #{res_gcn_decoder.3} parent=0 // pred_check
    _
  $region3: #{res_gcn_decoder.3} parent=0 // pred_check_branch
    %10 = sbr.rel (0) target = $region5
  $region4: #{res_gcn_decoder.3} parent=0 // pred_region
    _
  $region5: #{res_gcn_decoder.3} parent=0 // pred_fallthru
    _
  // Predicated region
  $region6: #{res_gcn_decoder.3} parent=0 // pred_check
    _
  $region7: #{res_gcn_decoder.3} parent=0 // pred_check_branch
    %12 = sbr.rel (0) target = $region9
  $region8: #{res_gcn_decoder.3} parent=0 // pred_region
    _
  $region9: #{res_gcn_decoder.3} parent=0 // pred_fallthru
    _
  // Predicated region
  $region10: #{res_gcn_decoder.3} parent=0 // pred_check
    _
  $region11: #{res_gcn_decoder.3} parent=0 // pred_check_branch
    %14 = sbr.rel (0) target = $region13
  $region12: #{res_gcn_decoder.3} parent=0 // pred_region
    _
  $region13: #{res_gcn_decoder.3} parent=0 // pred_fallthru
    _
  // Predicated region
  $region14: #{res_gcn_decoder.3} parent=0 // pred_check
    _
  $region15: #{res_gcn_decoder.3} parent=0 // pred_check_branch
    %16 = sbr.rel (0) target = $region17
  $region16: #{res_gcn_decoder.3} parent=0 // pred_region
    _
  $region17: #{res_gcn_decoder.3} parent=0 // pred_fallthru
    _
  %p18 = scmp.eq.s32.totalorder 0, 0
  // Predicated region
  $region18: #{res_gcn_decoder.3} parent=0 // pred_check
    %p19 = pneg %p18
  $region19: #{res_gcn_decoder.3} parent=0 // pred_check_branch
    %21 = sbr.rel (%p19) target = $region21
  $region20: #{res_gcn_decoder.3} parent=0 // pred_region
    %22 = vst [vmem:[#allocation2] sm:$0xff] 0.0
    %23 = vst [vmem:[#allocation2 + $0x8] sm:$0xff] 0.0
    %24 = vst [vmem:[#allocation2 + $0x10] sm:$0xff] 0.0
    %25 = vst [vmem:[#allocation2 + $0x18] sm:$0xff] 0.0
    %26 = vst [vmem:[#allocation2 + $0x20] sm:$0xff] 0.0
    %27 = vst [vmem:[#allocation2 + $0x28] sm:$0xff] 0.0
    %28 = vst [vmem:[#allocation2 + $0x30] sm:$0xff] 0.0
    %29 = vst [vmem:[#allocation2 + $0x38] sm:$0xff] 0.0
    %30 = vst [vmem:[#allocation2 + $0x40] sm:$0xff] 0.0
    %31 = vst [vmem:[#allocation2 + $0x48] sm:$0xff] 0.0
    %32 = vst [vmem:[#allocation2 + $0x50] sm:$0xff] 0.0
    %33 = vst [vmem:[#allocation2 + $0x58] sm:$0xff] 0.0
    %34 = vst [vmem:[#allocation2 + $0x60] sm:$0xff] 0.0
    %35 = vst [vmem:[#allocation2 + $0x68] sm:$0xff] 0.0
    %36 = vst [vmem:[#allocation2 + $0x70] sm:$0xff] 0.0
    %37 = vst [vmem:[#allocation2 + $0x78] sm:$0xff] 0.0
  $region21: #{res_gcn_decoder.3} parent=0 // pred_fallthru
    _
  %v38 = vld [vmem:[#allocation2] sm:$0xff]
  %v39 = vld [vmem:[#allocation2 + $0x8] sm:$0xff]
  %v40 = vld [vmem:[#allocation2 + $0x10] sm:$0xff]
  %v41 = vld [vmem:[#allocation2 + $0x18] sm:$0xff]
  %v42 = vld [vmem:[#allocation2 + $0x20] sm:$0xff]
  %v43 = vld [vmem:[#allocation2 + $0x28] sm:$0xff]
  %v44 = vld [vmem:[#allocation2 + $0x30] sm:$0xff]
  %v45 = vld [vmem:[#allocation2 + $0x38] sm:$0xff]
  %v46 = vld [vmem:[#allocation2 + $0x40] sm:$0xff]
  %v47 = vld [vmem:[#allocation2 + $0x48] sm:$0xff]
  %v48 = vld [vmem:[#allocation2 + $0x50] sm:$0xff]
  %v49 = vld [vmem:[#allocation2 + $0x58] sm:$0xff]
  %v50 = vld [vmem:[#allocation2 + $0x60] sm:$0xff]
  %v51 = vld [vmem:[#allocation2 + $0x68] sm:$0xff]
  %v52 = vld [vmem:[#allocation2 + $0x70] sm:$0xff]
  %v53 = vld [vmem:[#allocation2 + $0x78] sm:$0xff]
  %v54 = vld [vmem:[%s0] sm:$0xf]
  %v55 = vld [vmem:[%s0 + $0x4] sm:$0xf]
  %v56 = vld [vmem:[%s0 + $0x8] sm:$0xf]
  %v57 = vld [vmem:[%s0 + $0xc] sm:$0xf]
  %v58 = vld [vmem:[%s0 + $0x10] sm:$0xf]
  %v59 = vld [vmem:[%s0 + $0x14] sm:$0xf]
  %v60 = vld [vmem:[%s0 + $0x18] sm:$0xf]
  %v61 = vld [vmem:[%s0 + $0x1c] sm:$0xf]
  %v62 = vld [vmem:[%s0 + $0x20] sm:$0xf]
  %v63 = vld [vmem:[%s0 + $0x24] sm:$0xf]
  %v64 = vld [vmem:[%s0 + $0x28] sm:$0xf]
  %v65 = vld [vmem:[%s0 + $0x2c] sm:$0xf]
  %v66 = vld [vmem:[%s0 + $0x30] sm:$0xf]
  %v67 = vld [vmem:[%s0 + $0x34] sm:$0xf]
  %v68 = vld [vmem:[%s0 + $0x38] sm:$0xf]
  %v69 = vld [vmem:[%s0 + $0x3c] sm:$0xf]
  %v70 = vld [vmem:[%s1] sm:$0xf]
  %v71 = vld [vmem:[%s1 + $0x4] sm:$0xf]
  %v72 = vld [vmem:[%s1 + $0x8] sm:$0xf]
  %v73 = vld [vmem:[%s1 + $0xc] sm:$0xf]
  %v74 = vld [vmem:[%s1 + $0x10] sm:$0xf]
  %v75 = vld [vmem:[%s1 + $0x14] sm:$0xf]
  %v76 = vld [vmem:[%s1 + $0x18] sm:$0xf]
  %v77 = vld [vmem:[%s1 + $0x1c] sm:$0xf]
  %v78 = vld [vmem:[%s1 + $0x20] sm:$0xf]
  %v79 = vld [vmem:[%s1 + $0x24] sm:$0xf]
  %v80 = vld [vmem:[%s1 + $0x28] sm:$0xf]
  %v81 = vld [vmem:[%s1 + $0x2c] sm:$0xf]
  %v82 = vld [vmem:[%s1 + $0x30] sm:$0xf]
  %v83 = vld [vmem:[%s1 + $0x34] sm:$0xf]
  %v84 = vld [vmem:[%s1 + $0x38] sm:$0xf]
  %v85 = vld [vmem:[%s1 + $0x3c] sm:$0xf]
  %v102 = vunpack.c.l.b16 %v54
  %v103 = vunpack.c.l.b16 %v55
  %v104 = vunpack.c.l.b16 %v56
  %v105 = vunpack.c.l.b16 %v57
  %v106 = vunpack.c.l.b16 %v58
  %v107 = vunpack.c.l.b16 %v59
  %v108 = vunpack.c.l.b16 %v60
  %v109 = vunpack.c.l.b16 %v61
  %v110 = vunpack.c.l.b16 %v62
  %v111 = vunpack.c.l.b16 %v63
  %v112 = vunpack.c.l.b16 %v64
  %v113 = vunpack.c.l.b16 %v65
  %v114 = vunpack.c.l.b16 %v66
  %v115 = vunpack.c.l.b16 %v67
  %v116 = vunpack.c.l.b16 %v68
  %v117 = vunpack.c.l.b16 %v69
  %v118 = vpack.c.b16 %v103, %v102
  %v119 = vpack.c.b16 %v105, %v104
  %v120 = vpack.c.b16 %v107, %v106
  %v121 = vpack.c.b16 %v109, %v108
  %v122 = vpack.c.b16 %v111, %v110
  %v123 = vpack.c.b16 %v113, %v112
  %v124 = vpack.c.b16 %v115, %v114
  %v125 = vpack.c.b16 %v117, %v116
  %v150 = vunpack.c.l.b16 %v70
  %v151 = vunpack.c.l.b16 %v71
  %v152 = vunpack.c.l.b16 %v72
  %v153 = vunpack.c.l.b16 %v73
  %v154 = vunpack.c.l.b16 %v74
  %v155 = vunpack.c.l.b16 %v75
  %v156 = vunpack.c.l.b16 %v76
  %v157 = vunpack.c.l.b16 %v77
  %v158 = vunpack.c.l.b16 %v78
  %v159 = vunpack.c.l.b16 %v79
  %v160 = vunpack.c.l.b16 %v80
  %v161 = vunpack.c.l.b16 %v81
  %v162 = vunpack.c.l.b16 %v82
  %v163 = vunpack.c.l.b16 %v83
  %v164 = vunpack.c.l.b16 %v84
  %v165 = vunpack.c.l.b16 %v85
  %v166 = vpack.c.b16 %v151, %v150
  %v167 = vpack.c.b16 %v153, %v152
  %v168 = vpack.c.b16 %v155, %v154
  %v169 = vpack.c.b16 %v157, %v156
  %v170 = vpack.c.b16 %v159, %v158
  %v171 = vpack.c.b16 %v161, %v160
  %v172 = vpack.c.b16 %v163, %v162
  %v173 = vpack.c.b16 %v165, %v164
  %182 = vmatprep.subr.bf16.mxu0 0
  %183 = vmatpush1.bf16.msra.mxu0 %v166
  %184 = vmatprep.subr.bf16.mxu0 0
  %185 = vmatpush1.bf16.msra.mxu0 %v167
  %186 = vmatprep.subr.bf16.mxu0 0
  %187 = vmatpush1.bf16.msra.mxu0 %v168
  %188 = vmatprep.subr.bf16.mxu0 0
  %189 = vmatpush1.bf16.msra.mxu0 %v169
  %190 = vmatprep.subr.bf16.mxu0 0
  %191 = vmatpush1.bf16.msra.mxu0 %v170
  %192 = vmatprep.subr.bf16.mxu0 0
  %193 = vmatpush1.bf16.msra.mxu0 %v171
  %194 = vmatprep.subr.bf16.mxu0 0
  %195 = vmatpush1.bf16.msra.mxu0 %v172
  %196 = vmatprep.subr.bf16.mxu0 0
  %197 = vmatpush1.bf16.msra.mxu0 %v173
  %198 = vmatprep.subr.bf16.mxu0 0
  %199 = vmatpush1.bf16.msra.mxu0 0
  %200 = vmatprep.subr.bf16.mxu0 0
  %201 = vmatpush1.bf16.msra.mxu0 0
  %202 = vmatprep.subr.bf16.mxu0 0
  %203 = vmatpush1.bf16.msra.mxu0 0
  %204 = vmatprep.subr.bf16.mxu0 0
  %205 = vmatpush1.bf16.msra.mxu0 0
  %206 = vmatprep.subr.bf16.mxu0 0
  %207 = vmatpush1.bf16.msra.mxu0 0
  %208 = vmatprep.subr.bf16.mxu0 0
  %209 = vmatpush1.bf16.msra.mxu0 0
  %210 = vmatprep.subr.bf16.mxu0 0
  %211 = vmatpush1.bf16.msra.mxu0 0
  %212 = vmatprep.subr.bf16.mxu0 0
  %213 = vmatpush1.bf16.msra.mxu0 0
  %214 = vmatprep.mubr.bf16.mxu0 0
  %215 = vmatmul.mubr.bf16.gmra.mrb[0].mxu0 %v118
  %v216 = vpop.f32.mrb[0].mxu0
  %v217 = vadd.f32 0.0, %v216
  %v218 = vpop.f32.mrb[0].mxu0
  %v219 = vpop.f32.mrb[0].mxu0
  %v220 = vadd.f32 0.0, %v219
  %v221 = vpop.f32.mrb[0].mxu0
  %222 = vmatprep.mubr.bf16.mxu0 0
  %223 = vmatmul.mubr.bf16.gmra.mrb[0].mxu0 %v119
  %v224 = vpop.f32.mrb[0].mxu0
  %v225 = vadd.f32 0.0, %v224
  %v226 = vpop.f32.mrb[0].mxu0
  %v227 = vpop.f32.mrb[0].mxu0
  %v228 = vadd.f32 0.0, %v227
  %v229 = vpop.f32.mrb[0].mxu0
  %230 = vmatprep.mubr.bf16.mxu0 0
  %231 = vmatmul.mubr.bf16.gmra.mrb[0].mxu0 %v120
  %v232 = vpop.f32.mrb[0].mxu0
  %v233 = vadd.f32 0.0, %v232
  %v234 = vpop.f32.mrb[0].mxu0
  %v235 = vpop.f32.mrb[0].mxu0
  %v236 = vadd.f32 0.0, %v235
  %v237 = vpop.f32.mrb[0].mxu0
  %238 = vmatprep.mubr.bf16.mxu0 0
  %239 = vmatmul.mubr.bf16.gmra.mrb[0].mxu0 %v121
  %v240 = vpop.f32.mrb[0].mxu0
  %v241 = vadd.f32 0.0, %v240
  %v242 = vpop.f32.mrb[0].mxu0
  %v243 = vpop.f32.mrb[0].mxu0
  %v244 = vadd.f32 0.0, %v243
  %v245 = vpop.f32.mrb[0].mxu0
  %246 = vmatprep.mubr.bf16.mxu0 0
  %247 = vmatmul.mubr.bf16.gmra.mrb[0].mxu0 %v122
  %v248 = vpop.f32.mrb[0].mxu0
  %v249 = vadd.f32 0.0, %v248
  %v250 = vpop.f32.mrb[0].mxu0
  %v251 = vpop.f32.mrb[0].mxu0
  %v252 = vadd.f32 0.0, %v251
  %v253 = vpop.f32.mrb[0].mxu0
  %254 = vmatprep.mubr.bf16.mxu0 0
  %255 = vmatmul.mubr.bf16.gmra.mrb[0].mxu0 %v123
  %v256 = vpop.f32.mrb[0].mxu0
  %v257 = vadd.f32 0.0, %v256
  %v258 = vpop.f32.mrb[0].mxu0
  %v259 = vpop.f32.mrb[0].mxu0
  %v260 = vadd.f32 0.0, %v259
  %v261 = vpop.f32.mrb[0].mxu0
  %262 = vmatprep.mubr.bf16.mxu0 0
  %263 = vmatmul.mubr.bf16.gmra.mrb[0].mxu0 %v124
  %v264 = vpop.f32.mrb[0].mxu0
  %v265 = vadd.f32 0.0, %v264
  %v266 = vpop.f32.mrb[0].mxu0
  %v267 = vpop.f32.mrb[0].mxu0
  %v268 = vadd.f32 0.0, %v267
  %v269 = vpop.f32.mrb[0].mxu0
  %270 = vmatprep.mubr.bf16.mxu0 0
  %271 = vmatmul.mubr.bf16.gmra.mrb[0].mxu0 %v125
  %v272 = vpop.f32.mrb[0].mxu0
  %v273 = vadd.f32 0.0, %v272
  %v274 = vpop.f32.mrb[0].mxu0
  %v275 = vpop.f32.mrb[0].mxu0
  %v276 = vadd.f32 0.0, %v275
  %v277 = vpop.f32.mrb[0].mxu0
  %278 = vdwg.mxu0
  %v279 = vadd.f32 %v38, %v217
  %v280 = vadd.f32 %v39, %v220
  %v281 = vadd.f32 %v40, %v225
  %v282 = vadd.f32 %v41, %v228
  %v283 = vadd.f32 %v42, %v233
  %v284 = vadd.f32 %v43, %v236
  %v285 = vadd.f32 %v44, %v241
  %v286 = vadd.f32 %v45, %v244
  %v287 = vadd.f32 %v46, %v249
  %v288 = vadd.f32 %v47, %v252
  %v289 = vadd.f32 %v48, %v257
  %v290 = vadd.f32 %v49, %v260
  %v291 = vadd.f32 %v50, %v265
  %v292 = vadd.f32 %v51, %v268
  %v293 = vadd.f32 %v52, %v273
  %v294 = vadd.f32 %v53, %v276
  %295 = vst [vmem:[#allocation2] sm:$0xff] %v279
  %296 = vst [vmem:[#allocation2 + $0x8] sm:$0xff] %v280
  %297 = vst [vmem:[#allocation2 + $0x10] sm:$0xff] %v281
  %298 = vst [vmem:[#allocation2 + $0x18] sm:$0xff] %v282
  %299 = vst [vmem:[#allocation2 + $0x20] sm:$0xff] %v283
  %300 = vst [vmem:[#allocation2 + $0x28] sm:$0xff] %v284
  %301 = vst [vmem:[#allocation2 + $0x30] sm:$0xff] %v285
  %302 = vst [vmem:[#allocation2 + $0x38] sm:$0xff] %v286
  %303 = vst [vmem:[#allocation2 + $0x40] sm:$0xff] %v287
  %304 = vst [vmem:[#allocation2 + $0x48] sm:$0xff] %v288
  %305 = vst [vmem:[#allocation2 + $0x50] sm:$0xff] %v289
  %306 = vst [vmem:[#allocation2 + $0x58] sm:$0xff] %v290
  %307 = vst [vmem:[#allocation2 + $0x60] sm:$0xff] %v291
  %308 = vst [vmem:[#allocation2 + $0x68] sm:$0xff] %v292
  %309 = vst [vmem:[#allocation2 + $0x70] sm:$0xff] %v293
  %310 = vst [vmem:[#allocation2 + $0x78] sm:$0xff] %v294
  // Predicated region
  $region22: #{res_gcn_decoder.3} parent=0 // pred_check
    %p311 = pneg %p18
  $region23: #{res_gcn_decoder.3} parent=0 // pred_check_branch
    %313 = sbr.rel (%p311) target = $region25
  $region24: #{res_gcn_decoder.3} parent=0 // pred_region
    %v314 = vld [vmem:[#allocation2] sm:$0xff]
    %v315 = vld [vmem:[#allocation2 + $0x8] sm:$0xff]
    %v316 = vld [vmem:[#allocation2 + $0x10] sm:$0xff]
    %v317 = vld [vmem:[#allocation2 + $0x18] sm:$0xff]
    %v318 = vld [vmem:[#allocation2 + $0x20] sm:$0xff]
    %v319 = vld [vmem:[#allocation2 + $0x28] sm:$0xff]
    %v320 = vld [vmem:[#allocation2 + $0x30] sm:$0xff]
    %v321 = vld [vmem:[#allocation2 + $0x38] sm:$0xff]
    %v322 = vld [vmem:[#allocation2 + $0x40] sm:$0xff]
    %v323 = vld [vmem:[#allocation2 + $0x48] sm:$0xff]
    %v324 = vld [vmem:[#allocation2 + $0x50] sm:$0xff]
    %v325 = vld [vmem:[#allocation2 + $0x58] sm:$0xff]
    %v326 = vld [vmem:[#allocation2 + $0x60] sm:$0xff]
    %v327 = vld [vmem:[#allocation2 + $0x68] sm:$0xff]
    %v328 = vld [vmem:[#allocation2 + $0x70] sm:$0xff]
    %v329 = vld [vmem:[#allocation2 + $0x78] sm:$0xff]
    %v330 = vld [vmem:[%s2] sm:$0x1]
    %v332 = vlaneseq
    %v333 = vshrl.u32 %v332, 7
    %v334 = vsub.s32 0, %v333
    %v335 = vrot.slane %v330, %v334
    %v337 = vadd.f32 %v314, %v335
    %v338 = vadd.f32 %v315, %v335
    %v339 = vadd.f32 %v316, %v335
    %v340 = vadd.f32 %v317, %v335
    %v341 = vadd.f32 %v318, %v335
    %v342 = vadd.f32 %v319, %v335
    %v343 = vadd.f32 %v320, %v335
    %v344 = vadd.f32 %v321, %v335
    %v345 = vadd.f32 %v322, %v335
    %v346 = vadd.f32 %v323, %v335
    %v347 = vadd.f32 %v324, %v335
    %v348 = vadd.f32 %v325, %v335
    %v349 = vadd.f32 %v326, %v335
    %v350 = vadd.f32 %v327, %v335
    %v351 = vadd.f32 %v328, %v335
    %v352 = vadd.f32 %v329, %v335
    %v353 = vmul.f32 %v337, 0.01
    %v354 = vmul.f32 %v338, 0.01
    %v355 = vmul.f32 %v339, 0.01
    %v356 = vmul.f32 %v340, 0.01
    %v357 = vmul.f32 %v341, 0.01
    %v358 = vmul.f32 %v342, 0.01
    %v359 = vmul.f32 %v343, 0.01
    %v360 = vmul.f32 %v344, 0.01
    %v361 = vmul.f32 %v345, 0.01
    %v362 = vmul.f32 %v346, 0.01
    %v363 = vmul.f32 %v347, 0.01
    %v364 = vmul.f32 %v348, 0.01
    %v365 = vmul.f32 %v349, 0.01
    %v366 = vmul.f32 %v350, 0.01
    %v367 = vmul.f32 %v351, 0.01
    %v368 = vmul.f32 %v352, 0.01
    %v369 = vmax.f32 %v337, %v353
    %v370 = vmax.f32 %v338, %v354
    %v371 = vmax.f32 %v339, %v355
    %v372 = vmax.f32 %v340, %v356
    %v373 = vmax.f32 %v341, %v357
    %v374 = vmax.f32 %v342, %v358
    %v375 = vmax.f32 %v343, %v359
    %v376 = vmax.f32 %v344, %v360
    %v377 = vmax.f32 %v345, %v361
    %v378 = vmax.f32 %v346, %v362
    %v379 = vmax.f32 %v347, %v363
    %v380 = vmax.f32 %v348, %v364
    %v381 = vmax.f32 %v349, %v365
    %v382 = vmax.f32 %v350, %v366
    %v383 = vmax.f32 %v351, %v367
    %v384 = vmax.f32 %v352, %v368
    %v385 = vld [vmem:[%s3] sm:$0xff]
    %v386 = vld [vmem:[%s3 + $0x8] sm:$0xff]
    %v387 = vld [vmem:[%s3 + $0x10] sm:$0xff]
    %v388 = vld [vmem:[%s3 + $0x18] sm:$0xff]
    %v389 = vld [vmem:[%s3 + $0x20] sm:$0xff]
    %v390 = vld [vmem:[%s3 + $0x28] sm:$0xff]
    %v391 = vld [vmem:[%s3 + $0x30] sm:$0xff]
    %v392 = vld [vmem:[%s3 + $0x38] sm:$0xff]
    %v393 = vld [vmem:[%s3 + $0x40] sm:$0xff]
    %v394 = vld [vmem:[%s3 + $0x48] sm:$0xff]
    %v395 = vld [vmem:[%s3 + $0x50] sm:$0xff]
    %v396 = vld [vmem:[%s3 + $0x58] sm:$0xff]
    %v397 = vld [vmem:[%s3 + $0x60] sm:$0xff]
    %v398 = vld [vmem:[%s3 + $0x68] sm:$0xff]
    %v399 = vld [vmem:[%s3 + $0x70] sm:$0xff]
    %v400 = vld [vmem:[%s3 + $0x78] sm:$0xff]
    %v401 = vadd.f32 %v369, %v385
    %v402 = vadd.f32 %v370, %v386
    %v403 = vadd.f32 %v371, %v387
    %v404 = vadd.f32 %v372, %v388
    %v405 = vadd.f32 %v373, %v389
    %v406 = vadd.f32 %v374, %v390
    %v407 = vadd.f32 %v375, %v391
    %v408 = vadd.f32 %v376, %v392
    %v409 = vadd.f32 %v377, %v393
    %v410 = vadd.f32 %v378, %v394
    %v411 = vadd.f32 %v379, %v395
    %v412 = vadd.f32 %v380, %v396
    %v413 = vadd.f32 %v381, %v397
    %v414 = vadd.f32 %v382, %v398
    %v415 = vadd.f32 %v383, %v399
    %v416 = vadd.f32 %v384, %v400
    %417 = vst [vmem:[%s4] sm:$0xff] %v401
    %418 = vst [vmem:[%s4 + $0x8] sm:$0xff] %v402
    %419 = vst [vmem:[%s4 + $0x10] sm:$0xff] %v403
    %420 = vst [vmem:[%s4 + $0x18] sm:$0xff] %v404
    %421 = vst [vmem:[%s4 + $0x20] sm:$0xff] %v405
    %422 = vst [vmem:[%s4 + $0x28] sm:$0xff] %v406
    %423 = vst [vmem:[%s4 + $0x30] sm:$0xff] %v407
    %424 = vst [vmem:[%s4 + $0x38] sm:$0xff] %v408
    %425 = vst [vmem:[%s4 + $0x40] sm:$0xff] %v409
    %426 = vst [vmem:[%s4 + $0x48] sm:$0xff] %v410
    %427 = vst [vmem:[%s4 + $0x50] sm:$0xff] %v411
    %428 = vst [vmem:[%s4 + $0x58] sm:$0xff] %v412
    %429 = vst [vmem:[%s4 + $0x60] sm:$0xff] %v413
    %430 = vst [vmem:[%s4 + $0x68] sm:$0xff] %v414
    %431 = vst [vmem:[%s4 + $0x70] sm:$0xff] %v415
    %432 = vst [vmem:[%s4 + $0x78] sm:$0xff] %v416
  $region25: #{res_gcn_decoder.3} parent=0 // pred_fallthru
    _
  // Predicated region
  $region26: #{res_gcn_decoder.3} parent=0 // pred_check
    _
  $region27: #{res_gcn_decoder.3} parent=0 // pred_check_branch
    %434 = sbr.rel (0) target = $region29
  $region28: #{res_gcn_decoder.3} parent=0 // pred_region
    _
  $region29: #{res_gcn_decoder.3} parent=0 // pred_fallthru
    _
  // Predicated region
  $region30: #{res_gcn_decoder.3} parent=0 // pred_check
    _
  $region31: #{res_gcn_decoder.3} parent=0 // pred_check_branch
    %436 = sbr.rel (0) target = $region33
  $region32: #{res_gcn_decoder.3} parent=0 // pred_region
    _
  $region33: #{res_gcn_decoder.3} parent=0 // pred_fallthru
    _

// kernel: res_gcn_decoder.2
$region0: #{res_gcn_decoder.2}
  #allocation0 [shape = 'u32[]', space=smem, size = 0x4, offset = 0x4, fixed_abs, tag = 'smem constant byte address 0x4 - core index']
  #allocation1 [shape = 'u32[144,128]{1,0:T(1,128)}', space=vmem, size = 0x12000, scoped, tag = 'internal scratch']
  #allocation2 [shape = 'f32[128,128]{1,0:T(8,128)}', space=vmem, size = 0x10000, scoped, tag = 'scratch operand']
  %s0 = inlined_call_operand.vmem [shape: bf16[128,128], index: 0, kind: input, shape index: {}]
  %s1 = inlined_call_operand.vmem [shape: bf16[128,128], index: 1, kind: input, shape index: {}]
  %s2 = inlined_call_operand.vmem [shape: f32[128,128], index: 2, kind: input, shape index: {}]
  %s3 = inlined_call_operand.vmem [shape: f32[128,128], index: 3, kind: input, shape index: {}]
  %s4 = inlined_call_operand.vmem [shape: f32[128,128], index: 4, kind: input, shape index: {}]
  %s5 = inlined_call_operand.vmem [shape: f32[1,128], index: 5, kind: input, shape index: {}]
  %s6 = inlined_call_operand.vmem [shape: f32[128,128], index: 6, kind: input, shape index: {}]
  %s7 = inlined_call_operand.vmem [shape: f32[1,128], index: 7, kind: input, shape index: {}]
  %s8 = inlined_call_operand.vmem [shape: f32[128,128], index: 8, kind: input, shape index: {}]
  %s9 = inlined_call_operand.vmem [shape: bf16[128,128], index: 9, kind: output, shape index: {0}]
  %s10 = inlined_call_operand.vmem [shape: f32[128,128], index: 10, kind: output, shape index: {1}]
  %11 = xla_tuple %s9, %s10
  %s12 = sld [smem:[#allocation0]]
  $region62: #{res_gcn_decoder.2} parent=0
    _
  %s14 = ssub.s32 1, %s12
  %s15 = scalar_select 0, %s14, %s12
  // Predicated region
  $region2: #{res_gcn_decoder.2} parent=0 // pred_check
    _
  $region3: #{res_gcn_decoder.2} parent=0 // pred_check_branch
    %17 = sbr.rel (0) target = $region5
  $region4: #{res_gcn_decoder.2} parent=0 // pred_region
    _
  $region5: #{res_gcn_decoder.2} parent=0 // pred_fallthru
    _
  // Predicated region
  $region6: #{res_gcn_decoder.2} parent=0 // pred_check
    _
  $region7: #{res_gcn_decoder.2} parent=0 // pred_check_branch
    %19 = sbr.rel (0) target = $region9
  $region8: #{res_gcn_decoder.2} parent=0 // pred_region
    _
  $region9: #{res_gcn_decoder.2} parent=0 // pred_fallthru
    _
  // Predicated region
  $region10: #{res_gcn_decoder.2} parent=0 // pred_check
    _
  $region11: #{res_gcn_decoder.2} parent=0 // pred_check_branch
    %21 = sbr.rel (0) target = $region13
  $region12: #{res_gcn_decoder.2} parent=0 // pred_region
    _
  $region13: #{res_gcn_decoder.2} parent=0 // pred_fallthru
    _
  // Predicated region
  $region14: #{res_gcn_decoder.2} parent=0 // pred_check
    _
  $region15: #{res_gcn_decoder.2} parent=0 // pred_check_branch
    %23 = sbr.rel (0) target = $region17
  $region16: #{res_gcn_decoder.2} parent=0 // pred_region
    _
  $region17: #{res_gcn_decoder.2} parent=0 // pred_fallthru
    _
  // Predicated region
  $region18: #{res_gcn_decoder.2} parent=0 // pred_check
    _
  $region19: #{res_gcn_decoder.2} parent=0 // pred_check_branch
    %25 = sbr.rel (0) target = $region21
  $region20: #{res_gcn_decoder.2} parent=0 // pred_region
    _
  $region21: #{res_gcn_decoder.2} parent=0 // pred_fallthru
    _
  // Predicated region
  $region22: #{res_gcn_decoder.2} parent=0 // pred_check
    _
  $region23: #{res_gcn_decoder.2} parent=0 // pred_check_branch
    %27 = sbr.rel (0) target = $region25
  $region24: #{res_gcn_decoder.2} parent=0 // pred_region
    _
  $region25: #{res_gcn_decoder.2} parent=0 // pred_fallthru
    _
  // Predicated region
  $region26: #{res_gcn_decoder.2} parent=0 // pred_check
    _
  $region27: #{res_gcn_decoder.2} parent=0 // pred_check_branch
    %29 = sbr.rel (0) target = $region29
  $region28: #{res_gcn_decoder.2} parent=0 // pred_region
    _
  $region29: #{res_gcn_decoder.2} parent=0 // pred_fallthru
    _
  // Predicated region
  $region30: #{res_gcn_decoder.2} parent=0 // pred_check
    _
  $region31: #{res_gcn_decoder.2} parent=0 // pred_check_branch
    %31 = sbr.rel (0) target = $region33
  $region32: #{res_gcn_decoder.2} parent=0 // pred_region
    _
  $region33: #{res_gcn_decoder.2} parent=0 // pred_fallthru
    _
  // Predicated region
  $region34: #{res_gcn_decoder.2} parent=0 // pred_check
    _
  $region35: #{res_gcn_decoder.2} parent=0 // pred_check_branch
    %33 = sbr.rel (0) target = $region37
  $region36: #{res_gcn_decoder.2} parent=0 // pred_region
    _
  $region37: #{res_gcn_decoder.2} parent=0 // pred_fallthru
    _
  %p35 = scmp.eq.s32.totalorder 0, 0
  // Predicated region
  $region38: #{res_gcn_decoder.2} parent=0 // pred_check
    %p36 = pneg %p35
  $region39: #{res_gcn_decoder.2} parent=0 // pred_check_branch
    %38 = sbr.rel (%p36) target = $region41
  $region40: #{res_gcn_decoder.2} parent=0 // pred_region
    %39 = vst [vmem:[#allocation2] sm:$0xff] 0.0
    %40 = vst [vmem:[#allocation2 + $0x8] sm:$0xff] 0.0
    %41 = vst [vmem:[#allocation2 + $0x10] sm:$0xff] 0.0
    %42 = vst [vmem:[#allocation2 + $0x18] sm:$0xff] 0.0
    %43 = vst [vmem:[#allocation2 + $0x20] sm:$0xff] 0.0
    %44 = vst [vmem:[#allocation2 + $0x28] sm:$0xff] 0.0
    %45 = vst [vmem:[#allocation2 + $0x30] sm:$0xff] 0.0
    %46 = vst [vmem:[#allocation2 + $0x38] sm:$0xff] 0.0
    %47 = vst [vmem:[#allocation2 + $0x40] sm:$0xff] 0.0
    %48 = vst [vmem:[#allocation2 + $0x48] sm:$0xff] 0.0
    %49 = vst [vmem:[#allocation2 + $0x50] sm:$0xff] 0.0
    %50 = vst [vmem:[#allocation2 + $0x58] sm:$0xff] 0.0
    %51 = vst [vmem:[#allocation2 + $0x60] sm:$0xff] 0.0
    %52 = vst [vmem:[#allocation2 + $0x68] sm:$0xff] 0.0
    %53 = vst [vmem:[#allocation2 + $0x70] sm:$0xff] 0.0
    %54 = vst [vmem:[#allocation2 + $0x78] sm:$0xff] 0.0
  $region41: #{res_gcn_decoder.2} parent=0 // pred_fallthru
    _
  %v55 = vld [vmem:[#allocation2] sm:$0xff]
  %v56 = vld [vmem:[#allocation2 + $0x8] sm:$0xff]
  %v57 = vld [vmem:[#allocation2 + $0x10] sm:$0xff]
  %v58 = vld [vmem:[#allocation2 + $0x18] sm:$0xff]
  %v59 = vld [vmem:[#allocation2 + $0x20] sm:$0xff]
  %v60 = vld [vmem:[#allocation2 + $0x28] sm:$0xff]
  %v61 = vld [vmem:[#allocation2 + $0x30] sm:$0xff]
  %v62 = vld [vmem:[#allocation2 + $0x38] sm:$0xff]
  %v63 = vld [vmem:[#allocation2 + $0x40] sm:$0xff]
  %v64 = vld [vmem:[#allocation2 + $0x48] sm:$0xff]
  %v65 = vld [vmem:[#allocation2 + $0x50] sm:$0xff]
  %v66 = vld [vmem:[#allocation2 + $0x58] sm:$0xff]
  %v67 = vld [vmem:[#allocation2 + $0x60] sm:$0xff]
  %v68 = vld [vmem:[#allocation2 + $0x68] sm:$0xff]
  %v69 = vld [vmem:[#allocation2 + $0x70] sm:$0xff]
  %v70 = vld [vmem:[#allocation2 + $0x78] sm:$0xff]
  %v71 = vld [vmem:[%s0] sm:$0xf]
  %v72 = vld [vmem:[%s0 + $0x4] sm:$0xf]
  %v73 = vld [vmem:[%s0 + $0x8] sm:$0xf]
  %v74 = vld [vmem:[%s0 + $0xc] sm:$0xf]
  %v75 = vld [vmem:[%s0 + $0x10] sm:$0xf]
  %v76 = vld [vmem:[%s0 + $0x14] sm:$0xf]
  %v77 = vld [vmem:[%s0 + $0x18] sm:$0xf]
  %v78 = vld [vmem:[%s0 + $0x1c] sm:$0xf]
  %v79 = vld [vmem:[%s0 + $0x20] sm:$0xf]
  %v80 = vld [vmem:[%s0 + $0x24] sm:$0xf]
  %v81 = vld [vmem:[%s0 + $0x28] sm:$0xf]
  %v82 = vld [vmem:[%s0 + $0x2c] sm:$0xf]
  %v83 = vld [vmem:[%s0 + $0x30] sm:$0xf]
  %v84 = vld [vmem:[%s0 + $0x34] sm:$0xf]
  %v85 = vld [vmem:[%s0 + $0x38] sm:$0xf]
  %v86 = vld [vmem:[%s0 + $0x3c] sm:$0xf]
  %v87 = vld [vmem:[%s1] sm:$0xf]
  %v88 = vld [vmem:[%s1 + $0x4] sm:$0xf]
  %v89 = vld [vmem:[%s1 + $0x8] sm:$0xf]
  %v90 = vld [vmem:[%s1 + $0xc] sm:$0xf]
  %v91 = vld [vmem:[%s1 + $0x10] sm:$0xf]
  %v92 = vld [vmem:[%s1 + $0x14] sm:$0xf]
  %v93 = vld [vmem:[%s1 + $0x18] sm:$0xf]
  %v94 = vld [vmem:[%s1 + $0x1c] sm:$0xf]
  %v95 = vld [vmem:[%s1 + $0x20] sm:$0xf]
  %v96 = vld [vmem:[%s1 + $0x24] sm:$0xf]
  %v97 = vld [vmem:[%s1 + $0x28] sm:$0xf]
  %v98 = vld [vmem:[%s1 + $0x2c] sm:$0xf]
  %v99 = vld [vmem:[%s1 + $0x30] sm:$0xf]
  %v100 = vld [vmem:[%s1 + $0x34] sm:$0xf]
  %v101 = vld [vmem:[%s1 + $0x38] sm:$0xf]
  %v102 = vld [vmem:[%s1 + $0x3c] sm:$0xf]
  %v119 = vunpack.c.l.b16 %v71
  %v120 = vunpack.c.l.b16 %v72
  %v121 = vunpack.c.l.b16 %v73
  %v122 = vunpack.c.l.b16 %v74
  %v123 = vunpack.c.l.b16 %v75
  %v124 = vunpack.c.l.b16 %v76
  %v125 = vunpack.c.l.b16 %v77
  %v126 = vunpack.c.l.b16 %v78
  %v127 = vunpack.c.l.b16 %v79
  %v128 = vunpack.c.l.b16 %v80
  %v129 = vunpack.c.l.b16 %v81
  %v130 = vunpack.c.l.b16 %v82
  %v131 = vunpack.c.l.b16 %v83
  %v132 = vunpack.c.l.b16 %v84
  %v133 = vunpack.c.l.b16 %v85
  %v134 = vunpack.c.l.b16 %v86
  %v135 = vpack.c.b16 %v120, %v119
  %v136 = vpack.c.b16 %v122, %v121
  %v137 = vpack.c.b16 %v124, %v123
  %v138 = vpack.c.b16 %v126, %v125
  %v139 = vpack.c.b16 %v128, %v127
  %v140 = vpack.c.b16 %v130, %v129
  %v141 = vpack.c.b16 %v132, %v131
  %v142 = vpack.c.b16 %v134, %v133
  %v167 = vunpack.c.l.b16 %v87
  %v168 = vunpack.c.l.b16 %v88
  %v169 = vunpack.c.l.b16 %v89
  %v170 = vunpack.c.l.b16 %v90
  %v171 = vunpack.c.l.b16 %v91
  %v172 = vunpack.c.l.b16 %v92
  %v173 = vunpack.c.l.b16 %v93
  %v174 = vunpack.c.l.b16 %v94
  %v175 = vunpack.c.l.b16 %v95
  %v176 = vunpack.c.l.b16 %v96
  %v177 = vunpack.c.l.b16 %v97
  %v178 = vunpack.c.l.b16 %v98
  %v179 = vunpack.c.l.b16 %v99
  %v180 = vunpack.c.l.b16 %v100
  %v181 = vunpack.c.l.b16 %v101
  %v182 = vunpack.c.l.b16 %v102
  %v183 = vpack.c.b16 %v168, %v167
  %v184 = vpack.c.b16 %v170, %v169
  %v185 = vpack.c.b16 %v172, %v171
  %v186 = vpack.c.b16 %v174, %v173
  %v187 = vpack.c.b16 %v176, %v175
  %v188 = vpack.c.b16 %v178, %v177
  %v189 = vpack.c.b16 %v180, %v179
  %v190 = vpack.c.b16 %v182, %v181
  %199 = vmatprep.subr.bf16.mxu0 0
  %200 = vmatpush1.bf16.msra.mxu0 %v183
  %201 = vmatprep.subr.bf16.mxu0 0
  %202 = vmatpush1.bf16.msra.mxu0 %v184
  %203 = vmatprep.subr.bf16.mxu0 0
  %204 = vmatpush1.bf16.msra.mxu0 %v185
  %205 = vmatprep.subr.bf16.mxu0 0
  %206 = vmatpush1.bf16.msra.mxu0 %v186
  %207 = vmatprep.subr.bf16.mxu0 0
  %208 = vmatpush1.bf16.msra.mxu0 %v187
  %209 = vmatprep.subr.bf16.mxu0 0
  %210 = vmatpush1.bf16.msra.mxu0 %v188
  %211 = vmatprep.subr.bf16.mxu0 0
  %212 = vmatpush1.bf16.msra.mxu0 %v189
  %213 = vmatprep.subr.bf16.mxu0 0
  %214 = vmatpush1.bf16.msra.mxu0 %v190
  %215 = vmatprep.subr.bf16.mxu0 0
  %216 = vmatpush1.bf16.msra.mxu0 0
  %217 = vmatprep.subr.bf16.mxu0 0
  %218 = vmatpush1.bf16.msra.mxu0 0
  %219 = vmatprep.subr.bf16.mxu0 0
  %220 = vmatpush1.bf16.msra.mxu0 0
  %221 = vmatprep.subr.bf16.mxu0 0
  %222 = vmatpush1.bf16.msra.mxu0 0
  %223 = vmatprep.subr.bf16.mxu0 0
  %224 = vmatpush1.bf16.msra.mxu0 0
  %225 = vmatprep.subr.bf16.mxu0 0
  %226 = vmatpush1.bf16.msra.mxu0 0
  %227 = vmatprep.subr.bf16.mxu0 0
  %228 = vmatpush1.bf16.msra.mxu0 0
  %229 = vmatprep.subr.bf16.mxu0 0
  %230 = vmatpush1.bf16.msra.mxu0 0
  %231 = vmatprep.mubr.bf16.mxu0 0
  %232 = vmatmul.mubr.bf16.gmra.mrb[0].mxu0 %v135
  %v233 = vpop.f32.mrb[0].mxu0
  %v234 = vadd.f32 0.0, %v233
  %v235 = vpop.f32.mrb[0].mxu0
  %v236 = vpop.f32.mrb[0].mxu0
  %v237 = vadd.f32 0.0, %v236
  %v238 = vpop.f32.mrb[0].mxu0
  %239 = vmatprep.mubr.bf16.mxu0 0
  %240 = vmatmul.mubr.bf16.gmra.mrb[0].mxu0 %v136
  %v241 = vpop.f32.mrb[0].mxu0
  %v242 = vadd.f32 0.0, %v241
  %v243 = vpop.f32.mrb[0].mxu0
  %v244 = vpop.f32.mrb[0].mxu0
  %v245 = vadd.f32 0.0, %v244
  %v246 = vpop.f32.mrb[0].mxu0
  %247 = vmatprep.mubr.bf16.mxu0 0
  %248 = vmatmul.mubr.bf16.gmra.mrb[0].mxu0 %v137
  %v249 = vpop.f32.mrb[0].mxu0
  %v250 = vadd.f32 0.0, %v249
  %v251 = vpop.f32.mrb[0].mxu0
  %v252 = vpop.f32.mrb[0].mxu0
  %v253 = vadd.f32 0.0, %v252
  %v254 = vpop.f32.mrb[0].mxu0
  %255 = vmatprep.mubr.bf16.mxu0 0
  %256 = vmatmul.mubr.bf16.gmra.mrb[0].mxu0 %v138
  %v257 = vpop.f32.mrb[0].mxu0
  %v258 = vadd.f32 0.0, %v257
  %v259 = vpop.f32.mrb[0].mxu0
  %v260 = vpop.f32.mrb[0].mxu0
  %v261 = vadd.f32 0.0, %v260
  %v262 = vpop.f32.mrb[0].mxu0
  %263 = vmatprep.mubr.bf16.mxu0 0
  %264 = vmatmul.mubr.bf16.gmra.mrb[0].mxu0 %v139
  %v265 = vpop.f32.mrb[0].mxu0
  %v266 = vadd.f32 0.0, %v265
  %v267 = vpop.f32.mrb[0].mxu0
  %v268 = vpop.f32.mrb[0].mxu0
  %v269 = vadd.f32 0.0, %v268
  %v270 = vpop.f32.mrb[0].mxu0
  %271 = vmatprep.mubr.bf16.mxu0 0
  %272 = vmatmul.mubr.bf16.gmra.mrb[0].mxu0 %v140
  %v273 = vpop.f32.mrb[0].mxu0
  %v274 = vadd.f32 0.0, %v273
  %v275 = vpop.f32.mrb[0].mxu0
  %v276 = vpop.f32.mrb[0].mxu0
  %v277 = vadd.f32 0.0, %v276
  %v278 = vpop.f32.mrb[0].mxu0
  %279 = vmatprep.mubr.bf16.mxu0 0
  %280 = vmatmul.mubr.bf16.gmra.mrb[0].mxu0 %v141
  %v281 = vpop.f32.mrb[0].mxu0
  %v282 = vadd.f32 0.0, %v281
  %v283 = vpop.f32.mrb[0].mxu0
  %v284 = vpop.f32.mrb[0].mxu0
  %v285 = vadd.f32 0.0, %v284
  %v286 = vpop.f32.mrb[0].mxu0
  %287 = vmatprep.mubr.bf16.mxu0 0
  %288 = vmatmul.mubr.bf16.gmra.mrb[0].mxu0 %v142
  %v289 = vpop.f32.mrb[0].mxu0
  %v290 = vadd.f32 0.0, %v289
  %v291 = vpop.f32.mrb[0].mxu0
  %v292 = vpop.f32.mrb[0].mxu0
  %v293 = vadd.f32 0.0, %v292
  %v294 = vpop.f32.mrb[0].mxu0
  %295 = vdwg.mxu0
  %v296 = vadd.f32 %v55, %v234
  %v297 = vadd.f32 %v56, %v237
  %v298 = vadd.f32 %v57, %v242
  %v299 = vadd.f32 %v58, %v245
  %v300 = vadd.f32 %v59, %v250
  %v301 = vadd.f32 %v60, %v253
  %v302 = vadd.f32 %v61, %v258
  %v303 = vadd.f32 %v62, %v261
  %v304 = vadd.f32 %v63, %v266
  %v305 = vadd.f32 %v64, %v269
  %v306 = vadd.f32 %v65, %v274
  %v307 = vadd.f32 %v66, %v277
  %v308 = vadd.f32 %v67, %v282
  %v309 = vadd.f32 %v68, %v285
  %v310 = vadd.f32 %v69, %v290
  %v311 = vadd.f32 %v70, %v293
  %312 = vst [vmem:[#allocation2] sm:$0xff] %v296
  %313 = vst [vmem:[#allocation2 + $0x8] sm:$0xff] %v297
  %314 = vst [vmem:[#allocation2 + $0x10] sm:$0xff] %v298
  %315 = vst [vmem:[#allocation2 + $0x18] sm:$0xff] %v299
  %316 = vst [vmem:[#allocation2 + $0x20] sm:$0xff] %v300
  %317 = vst [vmem:[#allocation2 + $0x28] sm:$0xff] %v301
  %318 = vst [vmem:[#allocation2 + $0x30] sm:$0xff] %v302
  %319 = vst [vmem:[#allocation2 + $0x38] sm:$0xff] %v303
  %320 = vst [vmem:[#allocation2 + $0x40] sm:$0xff] %v304
  %321 = vst [vmem:[#allocation2 + $0x48] sm:$0xff] %v305
  %322 = vst [vmem:[#allocation2 + $0x50] sm:$0xff] %v306
  %323 = vst [vmem:[#allocation2 + $0x58] sm:$0xff] %v307
  %324 = vst [vmem:[#allocation2 + $0x60] sm:$0xff] %v308
  %325 = vst [vmem:[#allocation2 + $0x68] sm:$0xff] %v309
  %326 = vst [vmem:[#allocation2 + $0x70] sm:$0xff] %v310
  %327 = vst [vmem:[#allocation2 + $0x78] sm:$0xff] %v311
  // Predicated region
  $region42: #{res_gcn_decoder.2} parent=0 // pred_check
    %p328 = pneg %p35
  $region43: #{res_gcn_decoder.2} parent=0 // pred_check_branch
    %330 = sbr.rel (%p328) target = $region45
  $region44: #{res_gcn_decoder.2} parent=0 // pred_region
    %v331 = vld [vmem:[#allocation2] sm:$0xff]
    %v332 = vld [vmem:[#allocation2 + $0x8] sm:$0xff]
    %v333 = vld [vmem:[#allocation2 + $0x10] sm:$0xff]
    %v334 = vld [vmem:[#allocation2 + $0x18] sm:$0xff]
    %v335 = vld [vmem:[#allocation2 + $0x20] sm:$0xff]
    %v336 = vld [vmem:[#allocation2 + $0x28] sm:$0xff]
    %v337 = vld [vmem:[#allocation2 + $0x30] sm:$0xff]
    %v338 = vld [vmem:[#allocation2 + $0x38] sm:$0xff]
    %v339 = vld [vmem:[#allocation2 + $0x40] sm:$0xff]
    %v340 = vld [vmem:[#allocation2 + $0x48] sm:$0xff]
    %v341 = vld [vmem:[#allocation2 + $0x50] sm:$0xff]
    %v342 = vld [vmem:[#allocation2 + $0x58] sm:$0xff]
    %v343 = vld [vmem:[#allocation2 + $0x60] sm:$0xff]
    %v344 = vld [vmem:[#allocation2 + $0x68] sm:$0xff]
    %v345 = vld [vmem:[#allocation2 + $0x70] sm:$0xff]
    %v346 = vld [vmem:[#allocation2 + $0x78] sm:$0xff]
    %v347 = vld [vmem:[%s4] sm:$0xff]
    %v348 = vld [vmem:[%s4 + $0x8] sm:$0xff]
    %v349 = vld [vmem:[%s4 + $0x10] sm:$0xff]
    %v350 = vld [vmem:[%s4 + $0x18] sm:$0xff]
    %v351 = vld [vmem:[%s4 + $0x20] sm:$0xff]
    %v352 = vld [vmem:[%s4 + $0x28] sm:$0xff]
    %v353 = vld [vmem:[%s4 + $0x30] sm:$0xff]
    %v354 = vld [vmem:[%s4 + $0x38] sm:$0xff]
    %v355 = vld [vmem:[%s4 + $0x40] sm:$0xff]
    %v356 = vld [vmem:[%s4 + $0x48] sm:$0xff]
    %v357 = vld [vmem:[%s4 + $0x50] sm:$0xff]
    %v358 = vld [vmem:[%s4 + $0x58] sm:$0xff]
    %v359 = vld [vmem:[%s4 + $0x60] sm:$0xff]
    %v360 = vld [vmem:[%s4 + $0x68] sm:$0xff]
    %v361 = vld [vmem:[%s4 + $0x70] sm:$0xff]
    %v362 = vld [vmem:[%s4 + $0x78] sm:$0xff]
    %v363 = vld [vmem:[%s5] sm:$0x1]
    %v365 = vlaneseq
    %v366 = vshrl.u32 %v365, 7
    %v367 = vsub.s32 0, %v366
    %v368 = vrot.slane %v363, %v367
    %370 = vmatprep.subr.mxu0 0.0
    %371 = vmatpush1.msra.mxu0 %v347
    %372 = vmatprep.subr.mxu0 0.0
    %373 = vmatpush1.msra.mxu0 %v348
    %374 = vmatprep.subr.mxu0 0.0
    %375 = vmatpush1.msra.mxu0 %v349
    %376 = vmatprep.subr.mxu0 0.0
    %377 = vmatpush1.msra.mxu0 %v350
    %378 = vmatprep.subr.mxu0 0.0
    %379 = vmatpush1.msra.mxu0 %v351
    %380 = vmatprep.subr.mxu0 0.0
    %381 = vmatpush1.msra.mxu0 %v352
    %382 = vmatprep.subr.mxu0 0.0
    %383 = vmatpush1.msra.mxu0 %v353
    %384 = vmatprep.subr.mxu0 0.0
    %385 = vmatpush1.msra.mxu0 %v354
    %386 = vmatprep.subr.mxu0 0.0
    %387 = vmatpush1.msra.mxu0 %v355
    %388 = vmatprep.subr.mxu0 0.0
    %389 = vmatpush1.msra.mxu0 %v356
    %390 = vmatprep.subr.mxu0 0.0
    %391 = vmatpush1.msra.mxu0 %v357
    %392 = vmatprep.subr.mxu0 0.0
    %393 = vmatpush1.msra.mxu0 %v358
    %394 = vmatprep.subr.mxu0 0.0
    %395 = vmatpush1.msra.mxu0 %v359
    %396 = vmatprep.subr.mxu0 0.0
    %397 = vmatpush1.msra.mxu0 %v360
    %398 = vmatprep.subr.mxu0 0.0
    %399 = vmatpush1.msra.mxu0 %v361
    %400 = vmatprep.subr.mxu0 0.0
    %401 = vmatpush1.msra.mxu0 %v362
    %402 = vmatprep.subr.mxu0 0.0
    %403 = vmatpush1.msra.mxu0 0.0
    %404 = vmatprep.subr.mxu0 0.0
    %405 = vmatpush1.msra.mxu0 0.0
    %406 = vmatprep.subr.mxu0 0.0
    %407 = vmatpush1.msra.mxu0 0.0
    %408 = vmatprep.subr.mxu0 0.0
    %409 = vmatpush1.msra.mxu0 0.0
    %410 = vmatprep.subr.mxu0 0.0
    %411 = vmatpush1.msra.mxu0 0.0
    %412 = vmatprep.subr.mxu0 0.0
    %413 = vmatpush1.msra.mxu0 0.0
    %414 = vmatprep.subr.mxu0 0.0
    %415 = vmatpush1.msra.mxu0 0.0
    %416 = vmatprep.subr.mxu0 0.0
    %417 = vmatpush1.msra.mxu0 0.0
    %418 = vmatprep.subr.mxu0 0.0
    %419 = vmatpush1.msra.mxu0 0.0
    %420 = vmatprep.subr.mxu0 0.0
    %421 = vmatpush1.msra.mxu0 0.0
    %422 = vmatprep.subr.mxu0 0.0
    %423 = vmatpush1.msra.mxu0 0.0
    %424 = vmatprep.subr.mxu0 0.0
    %425 = vmatpush1.msra.mxu0 0.0
    %426 = vmatprep.subr.mxu0 0.0
    %427 = vmatpush1.msra.mxu0 0.0
    %428 = vmatprep.subr.mxu0 0.0
    %429 = vmatpush1.msra.mxu0 0.0
    %430 = vmatprep.subr.mxu0 0.0
    %431 = vmatpush1.msra.mxu0 0.0
    %432 = vmatprep.subr.mxu0 0.0
    %433 = vmatpush1.msra.mxu0 0.0
    %434 = vmatprep.mubr.f32.mxu0 0.0
    %435 = vmatmul.mubr.f32.gmra.mrb[0].mxu0 %v331
    %v436 = vpop.f32.mrb[0].mxu0
    %v437 = vadd.f32 %v368, %v436
    %v438 = vpop.f32.mrb[0].mxu0
    %439 = vmatprep.mubr.f32.mxu0 0.0
    %440 = vmatmul.mubr.f32.gmra.mrb[0].mxu0 %v332
    %v441 = vpop.f32.mrb[0].mxu0
    %v442 = vadd.f32 %v368, %v441
    %v443 = vpop.f32.mrb[0].mxu0
    %444 = vmatprep.mubr.f32.mxu0 0.0
    %445 = vmatmul.mubr.f32.gmra.mrb[0].mxu0 %v333
    %v446 = vpop.f32.mrb[0].mxu0
    %v447 = vadd.f32 %v368, %v446
    %v448 = vpop.f32.mrb[0].mxu0
    %449 = vmatprep.mubr.f32.mxu0 0.0
    %450 = vmatmul.mubr.f32.gmra.mrb[0].mxu0 %v334
    %v451 = vpop.f32.mrb[0].mxu0
    %v452 = vadd.f32 %v368, %v451
    %v453 = vpop.f32.mrb[0].mxu0
    %454 = vmatprep.mubr.f32.mxu0 0.0
    %455 = vmatmul.mubr.f32.gmra.mrb[0].mxu0 %v335
    %v456 = vpop.f32.mrb[0].mxu0
    %v457 = vadd.f32 %v368, %v456
    %v458 = vpop.f32.mrb[0].mxu0
    %459 = vmatprep.mubr.f32.mxu0 0.0
    %460 = vmatmul.mubr.f32.gmra.mrb[0].mxu0 %v336
    %v461 = vpop.f32.mrb[0].mxu0
    %v462 = vadd.f32 %v368, %v461
    %v463 = vpop.f32.mrb[0].mxu0
    %464 = vmatprep.mubr.f32.mxu0 0.0
    %465 = vmatmul.mubr.f32.gmra.mrb[0].mxu0 %v337
    %v466 = vpop.f32.mrb[0].mxu0
    %v467 = vadd.f32 %v368, %v466
    %v468 = vpop.f32.mrb[0].mxu0
    %469 = vmatprep.mubr.f32.mxu0 0.0
    %470 = vmatmul.mubr.f32.gmra.mrb[0].mxu0 %v338
    %v471 = vpop.f32.mrb[0].mxu0
    %v472 = vadd.f32 %v368, %v471
    %v473 = vpop.f32.mrb[0].mxu0
    %474 = vmatprep.mubr.f32.mxu0 0.0
    %475 = vmatmul.mubr.f32.gmra.mrb[0].mxu0 %v339
    %v476 = vpop.f32.mrb[0].mxu0
    %v477 = vadd.f32 %v368, %v476
    %v478 = vpop.f32.mrb[0].mxu0
    %479 = vmatprep.mubr.f32.mxu0 0.0
    %480 = vmatmul.mubr.f32.gmra.mrb[0].mxu0 %v340
    %v481 = vpop.f32.mrb[0].mxu0
    %v482 = vadd.f32 %v368, %v481
    %v483 = vpop.f32.mrb[0].mxu0
    %484 = vmatprep.mubr.f32.mxu0 0.0
    %485 = vmatmul.mubr.f32.gmra.mrb[0].mxu0 %v341
    %v486 = vpop.f32.mrb[0].mxu0
    %v487 = vadd.f32 %v368, %v486
    %v488 = vpop.f32.mrb[0].mxu0
    %489 = vmatprep.mubr.f32.mxu0 0.0
    %490 = vmatmul.mubr.f32.gmra.mrb[0].mxu0 %v342
    %v491 = vpop.f32.mrb[0].mxu0
    %v492 = vadd.f32 %v368, %v491
    %v493 = vpop.f32.mrb[0].mxu0
    %494 = vmatprep.mubr.f32.mxu0 0.0
    %495 = vmatmul.mubr.f32.gmra.mrb[0].mxu0 %v343
    %v496 = vpop.f32.mrb[0].mxu0
    %v497 = vadd.f32 %v368, %v496
    %v498 = vpop.f32.mrb[0].mxu0
    %499 = vmatprep.mubr.f32.mxu0 0.0
    %500 = vmatmul.mubr.f32.gmra.mrb[0].mxu0 %v344
    %v501 = vpop.f32.mrb[0].mxu0
    %v502 = vadd.f32 %v368, %v501
    %v503 = vpop.f32.mrb[0].mxu0
    %504 = vmatprep.mubr.f32.mxu0 0.0
    %505 = vmatmul.mubr.f32.gmra.mrb[0].mxu0 %v345
    %v506 = vpop.f32.mrb[0].mxu0
    %v507 = vadd.f32 %v368, %v506
    %v508 = vpop.f32.mrb[0].mxu0
    %509 = vmatprep.mubr.f32.mxu0 0.0
    %510 = vmatmul.mubr.f32.gmra.mrb[0].mxu0 %v346
    %v511 = vpop.f32.mrb[0].mxu0
    %v512 = vadd.f32 %v368, %v511
    %v513 = vpop.f32.mrb[0].mxu0
    %514 = vdwg.mxu0
    %v515 = vmul.f32 %v437, 0.01
    %v516 = vmul.f32 %v442, 0.01
    %v517 = vmul.f32 %v447, 0.01
    %v518 = vmul.f32 %v452, 0.01
    %v519 = vmul.f32 %v457, 0.01
    %v520 = vmul.f32 %v462, 0.01
    %v521 = vmul.f32 %v467, 0.01
    %v522 = vmul.f32 %v472, 0.01
    %v523 = vmul.f32 %v477, 0.01
    %v524 = vmul.f32 %v482, 0.01
    %v525 = vmul.f32 %v487, 0.01
    %v526 = vmul.f32 %v492, 0.01
    %v527 = vmul.f32 %v497, 0.01
    %v528 = vmul.f32 %v502, 0.01
    %v529 = vmul.f32 %v507, 0.01
    %v530 = vmul.f32 %v512, 0.01
    %v531 = vmax.f32 %v437, %v515
    %v532 = vmax.f32 %v442, %v516
    %v533 = vmax.f32 %v447, %v517
    %v534 = vmax.f32 %v452, %v518
    %v535 = vmax.f32 %v457, %v519
    %v536 = vmax.f32 %v462, %v520
    %v537 = vmax.f32 %v467, %v521
    %v538 = vmax.f32 %v472, %v522
    %v539 = vmax.f32 %v477, %v523
    %v540 = vmax.f32 %v482, %v524
    %v541 = vmax.f32 %v487, %v525
    %v542 = vmax.f32 %v492, %v526
    %v543 = vmax.f32 %v497, %v527
    %v544 = vmax.f32 %v502, %v528
    %v545 = vmax.f32 %v507, %v529
    %v546 = vmax.f32 %v512, %v530
    %v547 = vld [vmem:[%s3] sm:$0xff]
    %v548 = vld [vmem:[%s3 + $0x8] sm:$0xff]
    %v549 = vld [vmem:[%s3 + $0x10] sm:$0xff]
    %v550 = vld [vmem:[%s3 + $0x18] sm:$0xff]
    %v551 = vld [vmem:[%s3 + $0x20] sm:$0xff]
    %v552 = vld [vmem:[%s3 + $0x28] sm:$0xff]
    %v553 = vld [vmem:[%s3 + $0x30] sm:$0xff]
    %v554 = vld [vmem:[%s3 + $0x38] sm:$0xff]
    %v555 = vld [vmem:[%s3 + $0x40] sm:$0xff]
    %v556 = vld [vmem:[%s3 + $0x48] sm:$0xff]
    %v557 = vld [vmem:[%s3 + $0x50] sm:$0xff]
    %v558 = vld [vmem:[%s3 + $0x58] sm:$0xff]
    %v559 = vld [vmem:[%s3 + $0x60] sm:$0xff]
    %v560 = vld [vmem:[%s3 + $0x68] sm:$0xff]
    %v561 = vld [vmem:[%s3 + $0x70] sm:$0xff]
    %v562 = vld [vmem:[%s3 + $0x78] sm:$0xff]
    %v563 = vmul.f32 %v531, %v547
    %v564 = vmul.f32 %v532, %v548
    %v565 = vmul.f32 %v533, %v549
    %v566 = vmul.f32 %v534, %v550
    %v567 = vmul.f32 %v535, %v551
    %v568 = vmul.f32 %v536, %v552
    %v569 = vmul.f32 %v537, %v553
    %v570 = vmul.f32 %v538, %v554
    %v571 = vmul.f32 %v539, %v555
    %v572 = vmul.f32 %v540, %v556
    %v573 = vmul.f32 %v541, %v557
    %v574 = vmul.f32 %v542, %v558
    %v575 = vmul.f32 %v543, %v559
    %v576 = vmul.f32 %v544, %v560
    %v577 = vmul.f32 %v545, %v561
    %v578 = vmul.f32 %v546, %v562
    %v579 = vld [vmem:[%s8] sm:$0xff]
    %v580 = vld [vmem:[%s8 + $0x8] sm:$0xff]
    %v581 = vld [vmem:[%s8 + $0x10] sm:$0xff]
    %v582 = vld [vmem:[%s8 + $0x18] sm:$0xff]
    %v583 = vld [vmem:[%s8 + $0x20] sm:$0xff]
    %v584 = vld [vmem:[%s8 + $0x28] sm:$0xff]
    %v585 = vld [vmem:[%s8 + $0x30] sm:$0xff]
    %v586 = vld [vmem:[%s8 + $0x38] sm:$0xff]
    %v587 = vld [vmem:[%s8 + $0x40] sm:$0xff]
    %v588 = vld [vmem:[%s8 + $0x48] sm:$0xff]
    %v589 = vld [vmem:[%s8 + $0x50] sm:$0xff]
    %v590 = vld [vmem:[%s8 + $0x58] sm:$0xff]
    %v591 = vld [vmem:[%s8 + $0x60] sm:$0xff]
    %v592 = vld [vmem:[%s8 + $0x68] sm:$0xff]
    %v593 = vld [vmem:[%s8 + $0x70] sm:$0xff]
    %v594 = vld [vmem:[%s8 + $0x78] sm:$0xff]
    %595 = vmatprep.subr.mxu0 0.0
    %596 = vmatpush1.msra.mxu0 %v579
    %597 = vmatprep.subr.mxu0 0.0
    %598 = vmatpush1.msra.mxu0 %v580
    %599 = vmatprep.subr.mxu0 0.0
    %600 = vmatpush1.msra.mxu0 %v581
    %601 = vmatprep.subr.mxu0 0.0
    %602 = vmatpush1.msra.mxu0 %v582
    %603 = vmatprep.subr.mxu0 0.0
    %604 = vmatpush1.msra.mxu0 %v583
    %605 = vmatprep.subr.mxu0 0.0
    %606 = vmatpush1.msra.mxu0 %v584
    %607 = vmatprep.subr.mxu0 0.0
    %608 = vmatpush1.msra.mxu0 %v585
    %609 = vmatprep.subr.mxu0 0.0
    %610 = vmatpush1.msra.mxu0 %v586
    %611 = vmatprep.subr.mxu0 0.0
    %612 = vmatpush1.msra.mxu0 %v587
    %613 = vmatprep.subr.mxu0 0.0
    %614 = vmatpush1.msra.mxu0 %v588
    %615 = vmatprep.subr.mxu0 0.0
    %616 = vmatpush1.msra.mxu0 %v589
    %617 = vmatprep.subr.mxu0 0.0
    %618 = vmatpush1.msra.mxu0 %v590
    %619 = vmatprep.subr.mxu0 0.0
    %620 = vmatpush1.msra.mxu0 %v591
    %621 = vmatprep.subr.mxu0 0.0
    %622 = vmatpush1.msra.mxu0 %v592
    %623 = vmatprep.subr.mxu0 0.0
    %624 = vmatpush1.msra.mxu0 %v593
    %625 = vmatprep.subr.mxu0 0.0
    %626 = vmatpush1.msra.mxu0 %v594
    %627 = vmatprep.subr.mxu0 0.0
    %628 = vmatpush1.msra.mxu0 0.0
    %629 = vmatprep.subr.mxu0 0.0
    %630 = vmatpush1.msra.mxu0 0.0
    %631 = vmatprep.subr.mxu0 0.0
    %632 = vmatpush1.msra.mxu0 0.0
    %633 = vmatprep.subr.mxu0 0.0
    %634 = vmatpush1.msra.mxu0 0.0
    %635 = vmatprep.subr.mxu0 0.0
    %636 = vmatpush1.msra.mxu0 0.0
    %637 = vmatprep.subr.mxu0 0.0
    %638 = vmatpush1.msra.mxu0 0.0
    %639 = vmatprep.subr.mxu0 0.0
    %640 = vmatpush1.msra.mxu0 0.0
    %641 = vmatprep.subr.mxu0 0.0
    %642 = vmatpush1.msra.mxu0 0.0
    %643 = vmatprep.subr.mxu0 0.0
    %644 = vmatpush1.msra.mxu0 0.0
    %645 = vmatprep.subr.mxu0 0.0
    %646 = vmatpush1.msra.mxu0 0.0
    %647 = vmatprep.subr.mxu0 0.0
    %648 = vmatpush1.msra.mxu0 0.0
    %649 = vmatprep.subr.mxu0 0.0
    %650 = vmatpush1.msra.mxu0 0.0
    %651 = vmatprep.subr.mxu0 0.0
    %652 = vmatpush1.msra.mxu0 0.0
    %653 = vmatprep.subr.mxu0 0.0
    %654 = vmatpush1.msra.mxu0 0.0
    %655 = vmatprep.subr.mxu0 0.0
    %656 = vmatpush1.msra.mxu0 0.0
    %657 = vmatprep.subr.mxu0 0.0
    %658 = vmatpush1.msra.mxu0 0.0
    %659 = vmatprep.mubr.f32.mxu0 0.0
    %660 = vmatmul.mubr.f32.gmra.mrb[0].mxu0 %v563
    %v661 = vpop.f32.mrb[0].mxu0
    %v662 = vadd.f32 0.0, %v661
    %v663 = vpop.f32.mrb[0].mxu0
    %664 = vmatprep.mubr.f32.mxu0 0.0
    %665 = vmatmul.mubr.f32.gmra.mrb[0].mxu0 %v564
    %v666 = vpop.f32.mrb[0].mxu0
    %v667 = vadd.f32 0.0, %v666
    %v668 = vpop.f32.mrb[0].mxu0
    %669 = vmatprep.mubr.f32.mxu0 0.0
    %670 = vmatmul.mubr.f32.gmra.mrb[0].mxu0 %v565
    %v671 = vpop.f32.mrb[0].mxu0
    %v672 = vadd.f32 0.0, %v671
    %v673 = vpop.f32.mrb[0].mxu0
    %674 = vmatprep.mubr.f32.mxu0 0.0
    %675 = vmatmul.mubr.f32.gmra.mrb[0].mxu0 %v566
    %v676 = vpop.f32.mrb[0].mxu0
    %v677 = vadd.f32 0.0, %v676
    %v678 = vpop.f32.mrb[0].mxu0
    %679 = vmatprep.mubr.f32.mxu0 0.0
    %680 = vmatmul.mubr.f32.gmra.mrb[0].mxu0 %v567
    %v681 = vpop.f32.mrb[0].mxu0
    %v682 = vadd.f32 0.0, %v681
    %v683 = vpop.f32.mrb[0].mxu0
    %684 = vmatprep.mubr.f32.mxu0 0.0
    %685 = vmatmul.mubr.f32.gmra.mrb[0].mxu0 %v568
    %v686 = vpop.f32.mrb[0].mxu0
    %v687 = vadd.f32 0.0, %v686
    %v688 = vpop.f32.mrb[0].mxu0
    %689 = vmatprep.mubr.f32.mxu0 0.0
    %690 = vmatmul.mubr.f32.gmra.mrb[0].mxu0 %v569
    %v691 = vpop.f32.mrb[0].mxu0
    %v692 = vadd.f32 0.0, %v691
    %v693 = vpop.f32.mrb[0].mxu0
    %694 = vmatprep.mubr.f32.mxu0 0.0
    %695 = vmatmul.mubr.f32.gmra.mrb[0].mxu0 %v570
    %v696 = vpop.f32.mrb[0].mxu0
    %v697 = vadd.f32 0.0, %v696
    %v698 = vpop.f32.mrb[0].mxu0
    %699 = vmatprep.mubr.f32.mxu0 0.0
    %700 = vmatmul.mubr.f32.gmra.mrb[0].mxu0 %v571
    %v701 = vpop.f32.mrb[0].mxu0
    %v702 = vadd.f32 0.0, %v701
    %v703 = vpop.f32.mrb[0].mxu0
    %704 = vmatprep.mubr.f32.mxu0 0.0
    %705 = vmatmul.mubr.f32.gmra.mrb[0].mxu0 %v572
    %v706 = vpop.f32.mrb[0].mxu0
    %v707 = vadd.f32 0.0, %v706
    %v708 = vpop.f32.mrb[0].mxu0
    %709 = vmatprep.mubr.f32.mxu0 0.0
    %710 = vmatmul.mubr.f32.gmra.mrb[0].mxu0 %v573
    %v711 = vpop.f32.mrb[0].mxu0
    %v712 = vadd.f32 0.0, %v711
    %v713 = vpop.f32.mrb[0].mxu0
    %714 = vmatprep.mubr.f32.mxu0 0.0
    %715 = vmatmul.mubr.f32.gmra.mrb[0].mxu0 %v574
    %v716 = vpop.f32.mrb[0].mxu0
    %v717 = vadd.f32 0.0, %v716
    %v718 = vpop.f32.mrb[0].mxu0
    %719 = vmatprep.mubr.f32.mxu0 0.0
    %720 = vmatmul.mubr.f32.gmra.mrb[0].mxu0 %v575
    %v721 = vpop.f32.mrb[0].mxu0
    %v722 = vadd.f32 0.0, %v721
    %v723 = vpop.f32.mrb[0].mxu0
    %724 = vmatprep.mubr.f32.mxu0 0.0
    %725 = vmatmul.mubr.f32.gmra.mrb[0].mxu0 %v576
    %v726 = vpop.f32.mrb[0].mxu0
    %v727 = vadd.f32 0.0, %v726
    %v728 = vpop.f32.mrb[0].mxu0
    %729 = vmatprep.mubr.f32.mxu0 0.0
    %730 = vmatmul.mubr.f32.gmra.mrb[0].mxu0 %v577
    %v731 = vpop.f32.mrb[0].mxu0
    %v732 = vadd.f32 0.0, %v731
    %v733 = vpop.f32.mrb[0].mxu0
    %734 = vmatprep.mubr.f32.mxu0 0.0
    %735 = vmatmul.mubr.f32.gmra.mrb[0].mxu0 %v578
    %v736 = vpop.f32.mrb[0].mxu0
    %v737 = vadd.f32 0.0, %v736
    %v738 = vpop.f32.mrb[0].mxu0
    %739 = vdwg.mxu0
    %v740 = vpack.c.bf16 %v667, %v662
    %v741 = vpack.c.bf16 %v677, %v672
    %v742 = vpack.c.bf16 %v687, %v682
    %v743 = vpack.c.bf16 %v697, %v692
    %v744 = vpack.c.bf16 %v707, %v702
    %v745 = vpack.c.bf16 %v717, %v712
    %v746 = vpack.c.bf16 %v727, %v722
    %v747 = vpack.c.bf16 %v737, %v732
    %v756 = vunpack.c.l.b16 %v740
    %v757 = vunpack.c.h.b16 %v740
    %v758 = vunpack.c.l.b16 %v741
    %v759 = vunpack.c.h.b16 %v741
    %v760 = vunpack.c.l.b16 %v742
    %v761 = vunpack.c.h.b16 %v742
    %v762 = vunpack.c.l.b16 %v743
    %v763 = vunpack.c.h.b16 %v743
    %v764 = vunpack.c.l.b16 %v744
    %v765 = vunpack.c.h.b16 %v744
    %v766 = vunpack.c.l.b16 %v745
    %v767 = vunpack.c.h.b16 %v745
    %v768 = vunpack.c.l.b16 %v746
    %v769 = vunpack.c.h.b16 %v746
    %v770 = vunpack.c.l.b16 %v747
    %v771 = vunpack.c.h.b16 %v747
    %v772 = vpack.c.b16 %v756, %v756
    %v773 = vpack.c.b16 %v757, %v757
    %v774 = vpack.c.b16 %v758, %v758
    %v775 = vpack.c.b16 %v759, %v759
    %v776 = vpack.c.b16 %v760, %v760
    %v777 = vpack.c.b16 %v761, %v761
    %v778 = vpack.c.b16 %v762, %v762
    %v779 = vpack.c.b16 %v763, %v763
    %v780 = vpack.c.b16 %v764, %v764
    %v781 = vpack.c.b16 %v765, %v765
    %v782 = vpack.c.b16 %v766, %v766
    %v783 = vpack.c.b16 %v767, %v767
    %v784 = vpack.c.b16 %v768, %v768
    %v785 = vpack.c.b16 %v769, %v769
    %v786 = vpack.c.b16 %v770, %v770
    %v787 = vpack.c.b16 %v771, %v771
    %804 = vst [vmem:[%s9] sm:$0xf] %v772
    %805 = vst [vmem:[%s9 + $0x4] sm:$0xf] %v773
    %806 = vst [vmem:[%s9 + $0x8] sm:$0xf] %v774
    %807 = vst [vmem:[%s9 + $0xc] sm:$0xf] %v775
    %808 = vst [vmem:[%s9 + $0x10] sm:$0xf] %v776
    %809 = vst [vmem:[%s9 + $0x14] sm:$0xf] %v777
    %810 = vst [vmem:[%s9 + $0x18] sm:$0xf] %v778
    %811 = vst [vmem:[%s9 + $0x1c] sm:$0xf] %v779
    %812 = vst [vmem:[%s9 + $0x20] sm:$0xf] %v780
    %813 = vst [vmem:[%s9 + $0x24] sm:$0xf] %v781
    %814 = vst [vmem:[%s9 + $0x28] sm:$0xf] %v782
    %815 = vst [vmem:[%s9 + $0x2c] sm:$0xf] %v783
    %816 = vst [vmem:[%s9 + $0x30] sm:$0xf] %v784
    %817 = vst [vmem:[%s9 + $0x34] sm:$0xf] %v785
    %818 = vst [vmem:[%s9 + $0x38] sm:$0xf] %v786
    %819 = vst [vmem:[%s9 + $0x3c] sm:$0xf] %v787
    %v820 = vld [vmem:[%s2] sm:$0xff]
    %v821 = vld [vmem:[%s2 + $0x8] sm:$0xff]
    %v822 = vld [vmem:[%s2 + $0x10] sm:$0xff]
    %v823 = vld [vmem:[%s2 + $0x18] sm:$0xff]
    %v824 = vld [vmem:[%s2 + $0x20] sm:$0xff]
    %v825 = vld [vmem:[%s2 + $0x28] sm:$0xff]
    %v826 = vld [vmem:[%s2 + $0x30] sm:$0xff]
    %v827 = vld [vmem:[%s2 + $0x38] sm:$0xff]
    %v828 = vld [vmem:[%s2 + $0x40] sm:$0xff]
    %v829 = vld [vmem:[%s2 + $0x48] sm:$0xff]
    %v830 = vld [vmem:[%s2 + $0x50] sm:$0xff]
    %v831 = vld [vmem:[%s2 + $0x58] sm:$0xff]
    %v832 = vld [vmem:[%s2 + $0x60] sm:$0xff]
    %v833 = vld [vmem:[%s2 + $0x68] sm:$0xff]
    %v834 = vld [vmem:[%s2 + $0x70] sm:$0xff]
    %v835 = vld [vmem:[%s2 + $0x78] sm:$0xff]
    %v836 = vld [vmem:[%s6] sm:$0xff]
    %v837 = vld [vmem:[%s6 + $0x8] sm:$0xff]
    %v838 = vld [vmem:[%s6 + $0x10] sm:$0xff]
    %v839 = vld [vmem:[%s6 + $0x18] sm:$0xff]
    %v840 = vld [vmem:[%s6 + $0x20] sm:$0xff]
    %v841 = vld [vmem:[%s6 + $0x28] sm:$0xff]
    %v842 = vld [vmem:[%s6 + $0x30] sm:$0xff]
    %v843 = vld [vmem:[%s6 + $0x38] sm:$0xff]
    %v844 = vld [vmem:[%s6 + $0x40] sm:$0xff]
    %v845 = vld [vmem:[%s6 + $0x48] sm:$0xff]
    %v846 = vld [vmem:[%s6 + $0x50] sm:$0xff]
    %v847 = vld [vmem:[%s6 + $0x58] sm:$0xff]
    %v848 = vld [vmem:[%s6 + $0x60] sm:$0xff]
    %v849 = vld [vmem:[%s6 + $0x68] sm:$0xff]
    %v850 = vld [vmem:[%s6 + $0x70] sm:$0xff]
    %v851 = vld [vmem:[%s6 + $0x78] sm:$0xff]
    %v852 = vld [vmem:[%s7] sm:$0x1]
    %v854 = vlaneseq
    %v855 = vshrl.u32 %v854, 7
    %v856 = vsub.s32 0, %v855
    %v857 = vrot.slane %v852, %v856
    %859 = vmatprep.subr.mxu0 0.0
    %860 = vmatpush1.msra.mxu0 %v836
    %861 = vmatprep.subr.mxu0 0.0
    %862 = vmatpush1.msra.mxu0 %v837
    %863 = vmatprep.subr.mxu0 0.0
    %864 = vmatpush1.msra.mxu0 %v838
    %865 = vmatprep.subr.mxu0 0.0
    %866 = vmatpush1.msra.mxu0 %v839
    %867 = vmatprep.subr.mxu0 0.0
    %868 = vmatpush1.msra.mxu0 %v840
    %869 = vmatprep.subr.mxu0 0.0
    %870 = vmatpush1.msra.mxu0 %v841
    %871 = vmatprep.subr.mxu0 0.0
    %872 = vmatpush1.msra.mxu0 %v842
    %873 = vmatprep.subr.mxu0 0.0
    %874 = vmatpush1.msra.mxu0 %v843
    %875 = vmatprep.subr.mxu0 0.0
    %876 = vmatpush1.msra.mxu0 %v844
    %877 = vmatprep.subr.mxu0 0.0
    %878 = vmatpush1.msra.mxu0 %v845
    %879 = vmatprep.subr.mxu0 0.0
    %880 = vmatpush1.msra.mxu0 %v846
    %881 = vmatprep.subr.mxu0 0.0
    %882 = vmatpush1.msra.mxu0 %v847
    %883 = vmatprep.subr.mxu0 0.0
    %884 = vmatpush1.msra.mxu0 %v848
    %885 = vmatprep.subr.mxu0 0.0
    %886 = vmatpush1.msra.mxu0 %v849
    %887 = vmatprep.subr.mxu0 0.0
    %888 = vmatpush1.msra.mxu0 %v850
    %889 = vmatprep.subr.mxu0 0.0
    %890 = vmatpush1.msra.mxu0 %v851
    %891 = vmatprep.subr.mxu0 0.0
    %892 = vmatpush1.msra.mxu0 0.0
    %893 = vmatprep.subr.mxu0 0.0
    %894 = vmatpush1.msra.mxu0 0.0
    %895 = vmatprep.subr.mxu0 0.0
    %896 = vmatpush1.msra.mxu0 0.0
    %897 = vmatprep.subr.mxu0 0.0
    %898 = vmatpush1.msra.mxu0 0.0
    %899 = vmatprep.subr.mxu0 0.0
    %900 = vmatpush1.msra.mxu0 0.0
    %901 = vmatprep.subr.mxu0 0.0
    %902 = vmatpush1.msra.mxu0 0.0
    %903 = vmatprep.subr.mxu0 0.0
    %904 = vmatpush1.msra.mxu0 0.0
    %905 = vmatprep.subr.mxu0 0.0
    %906 = vmatpush1.msra.mxu0 0.0
    %907 = vmatprep.subr.mxu0 0.0
    %908 = vmatpush1.msra.mxu0 0.0
    %909 = vmatprep.subr.mxu0 0.0
    %910 = vmatpush1.msra.mxu0 0.0
    %911 = vmatprep.subr.mxu0 0.0
    %912 = vmatpush1.msra.mxu0 0.0
    %913 = vmatprep.subr.mxu0 0.0
    %914 = vmatpush1.msra.mxu0 0.0
    %915 = vmatprep.subr.mxu0 0.0
    %916 = vmatpush1.msra.mxu0 0.0
    %917 = vmatprep.subr.mxu0 0.0
    %918 = vmatpush1.msra.mxu0 0.0
    %919 = vmatprep.subr.mxu0 0.0
    %920 = vmatpush1.msra.mxu0 0.0
    %921 = vmatprep.subr.mxu0 0.0
    %922 = vmatpush1.msra.mxu0 0.0
    %923 = vmatprep.mubr.f32.mxu0 0.0
    %924 = vmatmul.mubr.f32.gmra.mrb[0].mxu0 %v820
    %v925 = vpop.f32.mrb[0].mxu0
    %v926 = vadd.f32 %v857, %v925
    %v927 = vpop.f32.mrb[0].mxu0
    %928 = vmatprep.mubr.f32.mxu0 0.0
    %929 = vmatmul.mubr.f32.gmra.mrb[0].mxu0 %v821
    %v930 = vpop.f32.mrb[0].mxu0
    %v931 = vadd.f32 %v857, %v930
    %v932 = vpop.f32.mrb[0].mxu0
    %933 = vmatprep.mubr.f32.mxu0 0.0
    %934 = vmatmul.mubr.f32.gmra.mrb[0].mxu0 %v822
    %v935 = vpop.f32.mrb[0].mxu0
    %v936 = vadd.f32 %v857, %v935
    %v937 = vpop.f32.mrb[0].mxu0
    %938 = vmatprep.mubr.f32.mxu0 0.0
    %939 = vmatmul.mubr.f32.gmra.mrb[0].mxu0 %v823
    %v940 = vpop.f32.mrb[0].mxu0
    %v941 = vadd.f32 %v857, %v940
    %v942 = vpop.f32.mrb[0].mxu0
    %943 = vmatprep.mubr.f32.mxu0 0.0
    %944 = vmatmul.mubr.f32.gmra.mrb[0].mxu0 %v824
    %v945 = vpop.f32.mrb[0].mxu0
    %v946 = vadd.f32 %v857, %v945
    %v947 = vpop.f32.mrb[0].mxu0
    %948 = vmatprep.mubr.f32.mxu0 0.0
    %949 = vmatmul.mubr.f32.gmra.mrb[0].mxu0 %v825
    %v950 = vpop.f32.mrb[0].mxu0
    %v951 = vadd.f32 %v857, %v950
    %v952 = vpop.f32.mrb[0].mxu0
    %953 = vmatprep.mubr.f32.mxu0 0.0
    %954 = vmatmul.mubr.f32.gmra.mrb[0].mxu0 %v826
    %v955 = vpop.f32.mrb[0].mxu0
    %v956 = vadd.f32 %v857, %v955
    %v957 = vpop.f32.mrb[0].mxu0
    %958 = vmatprep.mubr.f32.mxu0 0.0
    %959 = vmatmul.mubr.f32.gmra.mrb[0].mxu0 %v827
    %v960 = vpop.f32.mrb[0].mxu0
    %v961 = vadd.f32 %v857, %v960
    %v962 = vpop.f32.mrb[0].mxu0
    %963 = vmatprep.mubr.f32.mxu0 0.0
    %964 = vmatmul.mubr.f32.gmra.mrb[0].mxu0 %v828
    %v965 = vpop.f32.mrb[0].mxu0
    %v966 = vadd.f32 %v857, %v965
    %v967 = vpop.f32.mrb[0].mxu0
    %968 = vmatprep.mubr.f32.mxu0 0.0
    %969 = vmatmul.mubr.f32.gmra.mrb[0].mxu0 %v829
    %v970 = vpop.f32.mrb[0].mxu0
    %v971 = vadd.f32 %v857, %v970
    %v972 = vpop.f32.mrb[0].mxu0
    %973 = vmatprep.mubr.f32.mxu0 0.0
    %974 = vmatmul.mubr.f32.gmra.mrb[0].mxu0 %v830
    %v975 = vpop.f32.mrb[0].mxu0
    %v976 = vadd.f32 %v857, %v975
    %v977 = vpop.f32.mrb[0].mxu0
    %978 = vmatprep.mubr.f32.mxu0 0.0
    %979 = vmatmul.mubr.f32.gmra.mrb[0].mxu0 %v831
    %v980 = vpop.f32.mrb[0].mxu0
    %v981 = vadd.f32 %v857, %v980
    %v982 = vpop.f32.mrb[0].mxu0
    %983 = vmatprep.mubr.f32.mxu0 0.0
    %984 = vmatmul.mubr.f32.gmra.mrb[0].mxu0 %v832
    %v985 = vpop.f32.mrb[0].mxu0
    %v986 = vadd.f32 %v857, %v985
    %v987 = vpop.f32.mrb[0].mxu0
    %988 = vmatprep.mubr.f32.mxu0 0.0
    %989 = vmatmul.mubr.f32.gmra.mrb[0].mxu0 %v833
    %v990 = vpop.f32.mrb[0].mxu0
    %v991 = vadd.f32 %v857, %v990
    %v992 = vpop.f32.mrb[0].mxu0
    %993 = vmatprep.mubr.f32.mxu0 0.0
    %994 = vmatmul.mubr.f32.gmra.mrb[0].mxu0 %v834
    %v995 = vpop.f32.mrb[0].mxu0
    %v996 = vadd.f32 %v857, %v995
    %v997 = vpop.f32.mrb[0].mxu0
    %998 = vmatprep.mubr.f32.mxu0 0.0
    %999 = vmatmul.mubr.f32.gmra.mrb[0].mxu0 %v835
    %v1000 = vpop.f32.mrb[0].mxu0
    %v1001 = vadd.f32 %v857, %v1000
    %v1002 = vpop.f32.mrb[0].mxu0
    %1003 = vdwg.mxu0
    %1004 = vst [vmem:[%s10] sm:$0xff] %v926
    %1005 = vst [vmem:[%s10 + $0x8] sm:$0xff] %v931
    %1006 = vst [vmem:[%s10 + $0x10] sm:$0xff] %v936
    %1007 = vst [vmem:[%s10 + $0x18] sm:$0xff] %v941
    %1008 = vst [vmem:[%s10 + $0x20] sm:$0xff] %v946
    %1009 = vst [vmem:[%s10 + $0x28] sm:$0xff] %v951
    %1010 = vst [vmem:[%s10 + $0x30] sm:$0xff] %v956
    %1011 = vst [vmem:[%s10 + $0x38] sm:$0xff] %v961
    %1012 = vst [vmem:[%s10 + $0x40] sm:$0xff] %v966
    %1013 = vst [vmem:[%s10 + $0x48] sm:$0xff] %v971
    %1014 = vst [vmem:[%s10 + $0x50] sm:$0xff] %v976
    %1015 = vst [vmem:[%s10 + $0x58] sm:$0xff] %v981
    %1016 = vst [vmem:[%s10 + $0x60] sm:$0xff] %v986
    %1017 = vst [vmem:[%s10 + $0x68] sm:$0xff] %v991
    %1018 = vst [vmem:[%s10 + $0x70] sm:$0xff] %v996
    %1019 = vst [vmem:[%s10 + $0x78] sm:$0xff] %v1001
  $region45: #{res_gcn_decoder.2} parent=0 // pred_fallthru
    _
  // Predicated region
  $region46: #{res_gcn_decoder.2} parent=0 // pred_check
    _
  $region47: #{res_gcn_decoder.2} parent=0 // pred_check_branch
    %1021 = sbr.rel (0) target = $region49
  $region48: #{res_gcn_decoder.2} parent=0 // pred_region
    _
  $region49: #{res_gcn_decoder.2} parent=0 // pred_fallthru
    _
  // Predicated region
  $region50: #{res_gcn_decoder.2} parent=0 // pred_check
    _
  $region51: #{res_gcn_decoder.2} parent=0 // pred_check_branch
    %1023 = sbr.rel (0) target = $region53
  $region52: #{res_gcn_decoder.2} parent=0 // pred_region
    _
  $region53: #{res_gcn_decoder.2} parent=0 // pred_fallthru
    _
  // Predicated region
  $region54: #{res_gcn_decoder.2} parent=0 // pred_check
    _
  $region55: #{res_gcn_decoder.2} parent=0 // pred_check_branch
    %1025 = sbr.rel (0) target = $region57
  $region56: #{res_gcn_decoder.2} parent=0 // pred_region
    _
  $region57: #{res_gcn_decoder.2} parent=0 // pred_fallthru
    _
  // Predicated region
  $region58: #{res_gcn_decoder.2} parent=0 // pred_check
    _
  $region59: #{res_gcn_decoder.2} parent=0 // pred_check_branch
    %1027 = sbr.rel (0) target = $region61
  $region60: #{res_gcn_decoder.2} parent=0 // pred_region
    _
  $region61: #{res_gcn_decoder.2} parent=0 // pred_fallthru
    _

</llo_original>
